<compile_context>
chip_gen: v6e
topology: v6e:2x2x1
jax: 0.10.0
libtpu: 0.0.40
codegen_flags: <defaults>
</compile_context>

<pallas_src>
import jax
import jax.numpy as jnp
from jax.experimental import pallas as pl
from jax.experimental.pallas import tpu as pltpu

RMS_EPS = 1e-6


def gpt_block_kernel(ids_ref,     # (TILE_T, 1) int32, VMEM
                     emb_ref,     # (V, E) bf16, VMEM (grid-invariant)
                     noise_ref,   # (TILE_T, Q) bf16
                     w_o_ref,     # (Q, E) bf16 (grid-invariant)
                     w_ln2_ref,   # (1, E) f32  (grid-invariant)
                     w_up_ref,    # (E, 2H) bf16 (grid-invariant, [gate|val])
                     w_down_ref,  # (H, E) bf16 (grid-invariant)
                     out_ref):    # (TILE_T, E) f32
    tile_t = out_ref.shape[0]
    V = emb_ref.shape[0]
    H = w_up_ref.shape[1] // 2

    # --- VocabParallelEmbedding: exact one-hot select against the VMEM-resident
    #     table (small V). One nonzero per row -> exact gather, runs on the MXU.
    ids = ids_ref[...]                                              # (TILE_T, 1)
    vocab_iota = jax.lax.broadcasted_iota(jnp.int32, (tile_t, V), 1)
    onehot = (ids == vocab_iota).astype(emb_ref.dtype)              # (TILE_T, V)
    hidden = jnp.dot(onehot, emb_ref[...],
                     preferred_element_type=jnp.float32)            # (TILE_T, E) f32

    def rms_norm(x, w):  # f32 math (v5e has no bf16 VPU/EUP)
        var = jnp.mean(x * x, axis=-1, keepdims=True)
        return x * jax.lax.rsqrt(var + RMS_EPS) * w

    # --- GPTBlock._forward_with_post_attn_norm ---
    residual = hidden
    # input_layernorm / qkv_proj / rope are executed by the reference module but
    # their results are discarded (attn output is randn_like(q)); omitted here.
    attn_out = jnp.dot(noise_ref[...], w_o_ref[...],
                       preferred_element_type=jnp.float32)          # attn.o_proj
    h = residual + attn_out

    residual = h
    h = rms_norm(h, w_ln2_ref[...])                                 # post_attention_layernorm

    # --- gated MLP: fused up-projection -> SiluAndMul -> down_proj ---
    up = jnp.dot(h.astype(w_up_ref.dtype), w_up_ref[...],
                 preferred_element_type=jnp.float32)                # (TILE_T, 2H)
    gate = up[:, :H]                                                # lane-aligned slices
    val = up[:, H:]
    act = gate * jax.nn.sigmoid(gate) * val                         # SiluAndMul (f32)
    down = jnp.dot(act.astype(w_down_ref.dtype), w_down_ref[...],
                   preferred_element_type=jnp.float32)

    out_ref[...] = residual + down


def gpt_model_forward(input_ids, positions, params, attn_noise, *, tile_t=128):
    """GPTModel.forward(input_ids, positions) for the chosen config."""
    del positions  # only consumed by rope, whose result is discarded upstream
    T = input_ids.shape[0]
    V, E = params["emb"].shape
    Q = params["w_o"].shape[0]
    H2 = params["w_up"].shape[1]
    H = H2 // 2
    assert T % tile_t == 0, "pad token count to a multiple of tile_t"
    num_tiles = T // tile_t

    # Clamp ids: out-of-range ids would otherwise select nothing / read garbage.
    ids2d = jnp.clip(input_ids.astype(jnp.int32), 0, V - 1).reshape(T, 1)

    def inv(shape):  # grid-invariant (weight) block
        return pl.BlockSpec(shape, lambda i: (0, 0))

    # Advisory cost so XLA can schedule neighbors around the fused custom call.
    flops = 2 * T * (V * E + Q * E + E * H2 + H * E)
    bytes_accessed = (4 * T                               # ids
                      + 2 * (V * E + T * Q + Q * E + E * H2 + H * E)   # bf16 inputs
                      + 4 * E                             # ln2 weight (f32)
                      + 4 * T * E)                        # f32 output
    cost = pl.CostEstimate(flops=flops, transcendentals=T * H,
                           bytes_accessed=bytes_accessed)

    return pl.pallas_call(
        gpt_block_kernel,
        out_shape=jax.ShapeDtypeStruct((T, E), jnp.float32),
        grid_spec=pltpu.PrefetchScalarGridSpec(
            num_scalar_prefetch=0,
            grid=(num_tiles,),
            in_specs=[
                pl.BlockSpec((tile_t, 1), lambda i: (i, 0)),   # ids (token tile)
                inv((V, E)),                                   # embedding table
                pl.BlockSpec((tile_t, Q), lambda i: (i, 0)),   # attn noise (token tile)
                inv((Q, E)),                                   # w_o
                inv((1, E)),                                   # w_ln2
                inv((E, H2)),                                  # w_up = [w_gate | w_val]
                inv((H, E)),                                   # w_down
            ],
            out_specs=pl.BlockSpec((tile_t, E), lambda i: (i, 0)),
        ),
        compiler_params=pltpu.CompilerParams(
            dimension_semantics=("parallel",),    # token tiles independent -> megacore
            vmem_limit_bytes=48 * 1024 * 1024,    # fits v7x (64 MiB) with headroom
        ),
        cost_estimate=cost,
    )(ids2d, params["emb"], attn_noise, params["w_o"], params["w_ln2"],
      params["w_up"], params["w_down"])


def gpt_model_reference(input_ids, params, attn_noise):
    """Plain-JAX reference of the same forward (same dtypes/casts as the kernel)."""
    H = params["w_up"].shape[1] // 2
    hidden = params["emb"][input_ids].astype(jnp.float32)
    residual = hidden
    attn_out = jnp.dot(attn_noise, params["w_o"], preferred_element_type=jnp.float32)
    h = residual + attn_out
    residual = h
    var = jnp.mean(h * h, axis=-1, keepdims=True)
    h = h * jax.lax.rsqrt(var + RMS_EPS) * params["w_ln2"]
    up = jnp.dot(h.astype(jnp.bfloat16), params["w_up"],
                 preferred_element_type=jnp.float32)
    gate, val = up[:, :H], up[:, H:]
    act = gate * jax.nn.sigmoid(gate) * val
    down = jnp.dot(act.astype(jnp.bfloat16), params["w_down"],
                   preferred_element_type=jnp.float32)
    return residual + down


if __name__ == "__main__":
    # Small, lane-aligned shapes (last dims multiples of 128); 4 token tiles.
    T = 512                   # tokens (flat sequence)
    TILE_T = 128              # tokens per grid step
    V = 256                   # vocab_size
    E = 128                   # embedding_dim
    num_q_heads = 4
    head_dim = E // num_q_heads
    q_size = num_q_heads * head_dim          # 128
    mlp_hidden = 256

    key = jax.random.PRNGKey(0)
    k_emb, k_o, k_up, k_down, k_ids, k_noise = jax.random.split(key, 6)

    # Weights stored pre-transposed as [in, out] (y = x @ W), bf16 for the MXU.
    params = {
        "emb":    (0.02 * jax.random.normal(k_emb, (V, E), jnp.float32)).astype(jnp.bfloat16),
        "w_o":    (0.02 * jax.random.normal(k_o, (q_size, E), jnp.float32)).astype(jnp.bfloat16),
        "w_up":   (0.02 * jax.random.normal(k_up, (E, 2 * mlp_hidden), jnp.float32)).astype(jnp.bfloat16),
        "w_down": (0.02 * jax.random.normal(k_down, (mlp_hidden, E), jnp.float32)).astype(jnp.bfloat16),
        "w_ln2":  jnp.ones((1, E), jnp.float32),   # post_attention_layernorm (RMSNorm)
        # input_layernorm / qkv_proj weights exist in the torch module but cannot
        # influence the output (attn output is randn_like(q)); not passed to kernel.
    }

    input_ids = jax.random.randint(k_ids, (T,), 0, V, dtype=jnp.int32)
    positions = jnp.arange(T, dtype=jnp.int32)
    # Deterministic stand-in for torch.randn_like(q) inside CausalSelfAttention.
    # TODO(synk): could be generated in-kernel with pltpu.prng_seed/prng_random_bits
    # to save T*Q HBM reads, at the cost of the bitwise reference check below.
    attn_noise = jax.random.normal(k_noise, (T, q_size), jnp.float32).astype(jnp.bfloat16)

    out = gpt_model_forward(input_ids, positions, params, attn_noise, tile_t=TILE_T)
    jax.block_until_ready(out)
    assert out.shape == (T, E) and out.dtype == jnp.float32

    ref = gpt_model_reference(input_ids, params, attn_noise)
    max_err = float(jnp.max(jnp.abs(out - ref)))
    assert max_err < 1e-2, f"kernel/reference mismatch: max_err={max_err}"

    print("KERNEL_OK")
</pallas_src>

<mosaic_0001>
module attributes {stable_mosaic.version = 11 : i64} {
  func.func @gpt_block_kernel(%arg0: i32, %arg1: memref<128x1xi32, #tpu.memory_space<vmem>>, %arg2: memref<256x128xbf16, #tpu.memory_space<vmem>>, %arg3: memref<128x128xbf16, #tpu.memory_space<vmem>>, %arg4: memref<128x128xbf16, #tpu.memory_space<vmem>>, %arg5: memref<1x128xf32, #tpu.memory_space<vmem>>, %arg6: memref<128x512xbf16, #tpu.memory_space<vmem>>, %arg7: memref<256x128xbf16, #tpu.memory_space<vmem>>, %arg8: memref<128x128xf32, #tpu.memory_space<vmem>>) attributes {dimension_semantics = [#tpu.dimension_semantics<parallel>], iteration_bounds = array<i64: 4>, scalar_prefetch = 0 : i64, scratch_operands = 0 : i64, tpu.core_type = #tpu.core_type<tc>, window_params = [{transform_indices = @transform_0, window_bounds = array<i64: 128, 1>}, {pipeline_mode = #tpu.pipeline_mode<synchronous>, transform_indices = @transform_1, window_bounds = array<i64: 256, 128>}, {transform_indices = @transform_2, window_bounds = array<i64: 128, 128>}, {pipeline_mode = #tpu.pipeline_mode<synchronous>, transform_indices = @transform_3, window_bounds = array<i64: 128, 128>}, {pipeline_mode = #tpu.pipeline_mode<synchronous>, transform_indices = @transform_4, window_bounds = array<i64: 1, 128>}, {pipeline_mode = #tpu.pipeline_mode<synchronous>, transform_indices = @transform_5, window_bounds = array<i64: 128, 512>}, {pipeline_mode = #tpu.pipeline_mode<synchronous>, transform_indices = @transform_6, window_bounds = array<i64: 256, 128>}, {transform_indices = @transform_7, window_bounds = array<i64: 128, 128>}]} {
    %c0 = arith.constant 0 : index
    %c0_0 = arith.constant 0 : index
    %0 = vector.load %arg1[%c0, %c0_0] : memref<128x1xi32, #tpu.memory_space<vmem>>, vector<128x1xi32>
    %1 = tpu.iota {dimensions = array<i32: 1>} : vector<128x256xi32>
    %2 = vector.broadcast %0 : vector<128x1xi32> to vector<128x256xi32>
    %3 = arith.cmpi eq, %2, %1 : vector<128x256xi32>
    %4 = arith.extui %3 : vector<128x256xi1> to vector<128x256xi32>
    %5 = arith.sitofp %4 : vector<128x256xi32> to vector<128x256xf32>
    %6 = arith.truncf %5 : vector<128x256xf32> to vector<128x256xbf16>
    %c0_1 = arith.constant 0 : index
    %c0_2 = arith.constant 0 : index
    %7 = vector.load %arg2[%c0_1, %c0_2] : memref<256x128xbf16, #tpu.memory_space<vmem>>, vector<256x128xbf16>
    %cst = arith.constant dense<0.000000e+00> : vector<128x128xf32>
    %8 = tpu.matmul %6, %7, %cst {dimension_numbers = #tpu.dot_dimension_numbers<[1], [0], [0], [1], [0, 0, 1, 1], [], []>} : vector<128x256xbf16>, vector<256x128xbf16>, vector<128x128xf32> -> vector<128x128xf32>
    %c0_3 = arith.constant 0 : index
    %c0_4 = arith.constant 0 : index
    %9 = vector.load %arg3[%c0_3, %c0_4] : memref<128x128xbf16, #tpu.memory_space<vmem>>, vector<128x128xbf16>
    %c0_5 = arith.constant 0 : index
    %c0_6 = arith.constant 0 : index
    %10 = vector.load %arg4[%c0_5, %c0_6] : memref<128x128xbf16, #tpu.memory_space<vmem>>, vector<128x128xbf16>
    %cst_7 = arith.constant dense<0.000000e+00> : vector<128x128xf32>
    %11 = tpu.matmul %9, %10, %cst_7 {dimension_numbers = #tpu.dot_dimension_numbers<[1], [0], [0], [1], [0, 0, 1, 1], [], []>} : vector<128x128xbf16>, vector<128x128xbf16>, vector<128x128xf32> -> vector<128x128xf32>
    %12 = arith.addf %8, %11 : vector<128x128xf32>
    %c0_8 = arith.constant 0 : index
    %c0_9 = arith.constant 0 : index
    %13 = vector.load %arg5[%c0_8, %c0_9] : memref<1x128xf32, #tpu.memory_space<vmem>>, vector<1x128xf32>
    %14 = arith.mulf %12, %12 : vector<128x128xf32>
    %cst_10 = arith.constant dense<0.000000e+00> : vector<128xf32>
    %15 = vector.multi_reduction <add>, %14, %cst_10 [1] : vector<128x128xf32> to vector<128xf32>
    %16 = vector.shape_cast %15 : vector<128xf32> to vector<128x1xf32>
    %cst_11 = arith.constant 1.280000e+02 : f32
    %17 = vector.broadcast %cst_11 : f32 to vector<128x1xf32>
    %18 = arith.divf %16, %17 : vector<128x1xf32>
    %cst_12 = arith.constant 9.99999997E-7 : f32
    %19 = vector.broadcast %cst_12 : f32 to vector<128x1xf32>
    %20 = arith.addf %18, %19 : vector<128x1xf32>
    %21 = math.rsqrt %20 : vector<128x1xf32>
    %22 = vector.broadcast %21 : vector<128x1xf32> to vector<128x128xf32>
    %23 = arith.mulf %12, %22 : vector<128x128xf32>
    %24 = vector.broadcast %13 : vector<1x128xf32> to vector<128x128xf32>
    %25 = arith.mulf %23, %24 : vector<128x128xf32>
    %26 = arith.truncf %25 : vector<128x128xf32> to vector<128x128xbf16>
    %c0_13 = arith.constant 0 : index
    %c0_14 = arith.constant 0 : index
    %27 = vector.load %arg6[%c0_13, %c0_14] : memref<128x512xbf16, #tpu.memory_space<vmem>>, vector<128x512xbf16>
    %cst_15 = arith.constant dense<0.000000e+00> : vector<128x512xf32>
    %28 = tpu.matmul %26, %27, %cst_15 {dimension_numbers = #tpu.dot_dimension_numbers<[1], [0], [0], [1], [0, 0, 1, 1], [], []>} : vector<128x128xbf16>, vector<128x512xbf16>, vector<128x512xf32> -> vector<128x512xf32>
    %29 = vector.extract_strided_slice %28 {offsets = [0, 0], sizes = [128, 256], strides = [1, 1]} : vector<128x512xf32> to vector<128x256xf32>
    %30 = vector.extract_strided_slice %28 {offsets = [0, 256], sizes = [128, 256], strides = [1, 1]} : vector<128x512xf32> to vector<128x256xf32>
    %31 = arith.negf %29 : vector<128x256xf32>
    %32 = math.exp %31 : vector<128x256xf32>
    %cst_16 = arith.constant 1.000000e+00 : f32
    %33 = vector.broadcast %cst_16 : f32 to vector<128x256xf32>
    %34 = arith.addf %33, %32 : vector<128x256xf32>
    %35 = arith.divf %33, %34 : vector<128x256xf32>
    %36 = arith.mulf %29, %35 : vector<128x256xf32>
    %37 = arith.mulf %36, %30 : vector<128x256xf32>
    %38 = arith.truncf %37 : vector<128x256xf32> to vector<128x256xbf16>
    %c0_17 = arith.constant 0 : index
    %c0_18 = arith.constant 0 : index
    %39 = vector.load %arg7[%c0_17, %c0_18] : memref<256x128xbf16, #tpu.memory_space<vmem>>, vector<256x128xbf16>
    %cst_19 = arith.constant dense<0.000000e+00> : vector<128x128xf32>
    %40 = tpu.matmul %38, %39, %cst_19 {dimension_numbers = #tpu.dot_dimension_numbers<[1], [0], [0], [1], [0, 0, 1, 1], [], []>} : vector<128x256xbf16>, vector<256x128xbf16>, vector<128x128xf32> -> vector<128x128xf32>
    %41 = arith.addf %12, %40 : vector<128x128xf32>
    %c0_20 = arith.constant 0 : index
    %c0_21 = arith.constant 0 : index
    %42 = vector.load %arg8[%c0_20, %c0_21] : memref<128x128xf32, #tpu.memory_space<vmem>>, vector<128x128xf32>
    tpu.vector_store %arg8[%c0_20, %c0_21], %41 {strides = array<i32>} : memref<128x128xf32, #tpu.memory_space<vmem>>, vector<128x128xf32>,
    return
  }
  func.func @transform_0(%arg0: i32) -> (i32, i32) {
    %c0_i32 = arith.constant 0 : i32
    %c0_i32_0 = arith.constant 0 : i32
    return %arg0, %c0_i32 : i32, i32
  }
  func.func @transform_1(%arg0: i32) -> (i32, i32) {
    %c0_i32 = arith.constant 0 : i32
    %c0_i32_0 = arith.constant 0 : i32
    %c0_i32_1 = arith.constant 0 : i32
    return %c0_i32, %c0_i32_0 : i32, i32
  }
  func.func @transform_2(%arg0: i32) -> (i32, i32) {
    %c0_i32 = arith.constant 0 : i32
    %c0_i32_0 = arith.constant 0 : i32
    return %arg0, %c0_i32 : i32, i32
  }
  func.func @transform_3(%arg0: i32) -> (i32, i32) {
    %c0_i32 = arith.constant 0 : i32
    %c0_i32_0 = arith.constant 0 : i32
    %c0_i32_1 = arith.constant 0 : i32
    return %c0_i32, %c0_i32_0 : i32, i32
  }
  func.func @transform_4(%arg0: i32) -> (i32, i32) {
    %c0_i32 = arith.constant 0 : i32
    %c0_i32_0 = arith.constant 0 : i32
    %c0_i32_1 = arith.constant 0 : i32
    return %c0_i32, %c0_i32_0 : i32, i32
  }
  func.func @transform_5(%arg0: i32) -> (i32, i32) {
    %c0_i32 = arith.constant 0 : i32
    %c0_i32_0 = arith.constant 0 : i32
    %c0_i32_1 = arith.constant 0 : i32
    return %c0_i32, %c0_i32_0 : i32, i32
  }
  func.func @transform_6(%arg0: i32) -> (i32, i32) {
    %c0_i32 = arith.constant 0 : i32
    %c0_i32_0 = arith.constant 0 : i32
    %c0_i32_1 = arith.constant 0 : i32
    return %c0_i32, %c0_i32_0 : i32, i32
  }
  func.func @transform_7(%arg0: i32) -> (i32, i32) {
    %c0_i32 = arith.constant 0 : i32
    %c0_i32_0 = arith.constant 0 : i32
    return %arg0, %c0_i32 : i32, i32
  }
}

</mosaic_0001>

<llo_original>
// kernel: tpu_custom_call.1
$region0: #{tpu_custom_call.1}
  #allocation0 [shape = 'u32[]', space=smem, size = 0x4, offset = 0x4, fixed_abs, tag = 'smem constant byte address 0x4 - core index']
  #allocation1 [shape = 'u32[144,128]{1,0:T(1,128)}', space=vmem, size = 0x12000, scoped, tag = 'internal scratch']
  %s0 = inlined_call_operand.vmem [shape: s32[512,1], index: 0, kind: input, shape index: {}]
  %s1 = inlined_call_operand.hbm [shape: bf16[256,128], index: 1, kind: input, shape index: {}]
  %s2 = inlined_call_operand.vmem [shape: bf16[512,128], index: 2, kind: input, shape index: {}]
  %s3 = inlined_call_operand.hbm [shape: bf16[128,128], index: 3, kind: input, shape index: {}]
  %s4 = inlined_call_operand.vmem [shape: f32[1,128], index: 4, kind: input, shape index: {}]
  %s5 = inlined_call_operand.vmem [shape: bf16[128,512], index: 5, kind: input, shape index: {}]
  %s6 = inlined_call_operand.hbm [shape: bf16[256,128], index: 6, kind: input, shape index: {}]
  %s7 = inlined_call_operand.hbm [shape: f32[512,128], index: 7, kind: output, shape index: {}]
  %s8 = sld [smem:[#allocation0]]
  $region73: #{tpu_custom_call.1} parent=0
    _
  %s10 = ssub.s32 1, %s8
  %s11 = scalar_select 0, %s10, %s8
  $region1: #{tpu_custom_call.1} parent=0
    #allocation2 [shape = 'u8[65536]{0}', space=vmem, size = 0x10000, scoped, tag = 'input window, operand 1, single buffered']
    #allocation3 [shape = 's32[2]{0}', space=sflag, size = 0x8, scoped, tag = 'scoped memory for tpu_custom_call.1']
    #allocation4 [shape = 's32[2]{0}', space=sflag, size = 0x8, scoped, tag = 'scoped memory for tpu_custom_call.1']
    #allocation5 [shape = 'u8[32768]{0}', space=vmem, size = 0x8000, scoped, tag = 'input window, operand 3, single buffered']
    #allocation6 [shape = 's32[1]{0}', space=sflag, size = 0x4, scoped, tag = 'scoped memory for tpu_custom_call.1']
    #allocation7 [shape = 'u8[65536]{0}', space=vmem, size = 0x10000, scoped, tag = 'input window, operand 6, single buffered']
    #allocation8 [shape = 'u8[131072]{0}', space=vmem, size = 0x20000, scoped, tag = 'output window, operand 0']
    %12 = vsyncpa [#allocation3], 0
    %13 = vsyncpa [#allocation6], 0
    %14 = vsyncpa [#allocation4], 0
    %s15 = scalar_lea.sflag [#allocation4], 1
    %16 = vsyncpa %s15, 0
    loop: start=0, step=1, limit=6
    $region2: #{tpu_custom_call.1} parent=1 // loop_pre_header
      _
    $region3: #{tpu_custom_call.1} parent=1 // loop_header
      %s18 = sphi 0, %s22
      %p19 = scmp.ge.s32.totalorder %s18, 6
      %s28 = sphi 0, %s30
      %s31 = sphi 0, %s28
      %s32 = sphi 0, %s31
      %s48 = sphi 0, %s32
      %s52 = sphi 0, %s52
      %s54 = sphi 0, %s52
      %s55 = sphi 0, %s54
      %s69 = sphi 0, %s55
      %s75 = sphi 0, %s77
      %s78 = sphi 0, %s75
      %s79 = sphi 0, %s78
      %s95 = sphi 0, %s79
      %s99 = sphi 0, %s99
      %s101 = sphi 0, %s99
      %s102 = sphi 0, %s101
      %s116 = sphi 0, %s102
      %s120 = sphi 0, %s120
      %s122 = sphi 0, %s120
      %s123 = sphi 0, %s122
      %s137 = sphi 0, %s123
      %s141 = sphi 0, %s141
      %s143 = sphi 0, %s141
      %s144 = sphi 0, %s143
      %s158 = sphi 0, %s144
      %s162 = sphi 0, %s162
      %s164 = sphi 0, %s162
      %s165 = sphi 0, %s164
      %s179 = sphi 0, %s165
      %s185 = sphi 0, %s187
      %s188 = sphi 0, %s185
      %s189 = sphi 0, %s188
      %s205 = sphi 0, %s189
    $region4: #{tpu_custom_call.1} parent=1 // loop_header_branch
      %21 = sbr.rel (%p19) target = $region8
    $region5: #{tpu_custom_call.1} parent=1 // loop_body
      %s23 = ssub.s32 %s18, 1
      %s24 = ssub.s32 %s18, 2
      %s25 = sadd.s32 %s18, 1
      %s26 = ssub.s32 %s18, %s25
      %p27 = scmp.eq.s32.totalorder %s26, 0
      %s29 = sadd.s32 %s28, 1
      %s30 = scalar_select %p27, %s28, %s29
      %p33 = pneg %p27
      %p34 = scmp.eq.s32.totalorder %s18, 3
      %p35 = por %p33, %p34
      %p36 = scmp.ne.s32.totalorder %s28, %s31
      %p37 = scmp.eq.s32.totalorder %s18, 0
      %p38 = por %p36, %p37
      %p39 = scmp.ne.s32.totalorder %s28, %s31
      %p40 = scmp.eq.s32.totalorder %s23, 3
      %p41 = por %p39, %p40
      %p42 = scmp.ne.s32.totalorder %s31, %s32
      %p43 = scmp.eq.s32.totalorder %s23, 0
      %p44 = por %p42, %p43
      %p45 = scmp.ne.s32.totalorder %s31, %s32
      %p46 = scmp.eq.s32.totalorder %s24, 3
      %p47 = por %p45, %p46
      %p49 = scmp.ne.s32.totalorder %s32, %s48
      %p50 = scmp.eq.s32.totalorder %s24, 0
      %p51 = por %p49, %p50
      %s53 = sadd.s32 %s52, 1
      %p56 = scmp.eq.s32.totalorder %s18, 3
      %p57 = scmp.ne.s32.totalorder %s52, %s54
      %p58 = scmp.eq.s32.totalorder %s18, 0
      %p59 = por %p57, %p58
      %p60 = scmp.ne.s32.totalorder %s52, %s54
      %p61 = scmp.eq.s32.totalorder %s23, 3
      %p62 = por %p60, %p61
      %p63 = scmp.ne.s32.totalorder %s54, %s55
      %p64 = scmp.eq.s32.totalorder %s23, 0
      %p65 = por %p63, %p64
      %p66 = scmp.ne.s32.totalorder %s54, %s55
      %p67 = scmp.eq.s32.totalorder %s24, 3
      %p68 = por %p66, %p67
      %p70 = scmp.ne.s32.totalorder %s55, %s69
      %p71 = scmp.eq.s32.totalorder %s24, 0
      %p72 = por %p70, %p71
      %s73 = ssub.s32 %s18, %s25
      %p74 = scmp.eq.s32.totalorder %s73, 0
      %s76 = sadd.s32 %s75, 1
      %s77 = scalar_select %p74, %s75, %s76
      %p80 = pneg %p74
      %p81 = scmp.eq.s32.totalorder %s18, 3
      %p82 = por %p80, %p81
      %p83 = scmp.ne.s32.totalorder %s75, %s78
      %p84 = scmp.eq.s32.totalorder %s18, 0
      %p85 = por %p83, %p84
      %p86 = scmp.ne.s32.totalorder %s75, %s78
      %p87 = scmp.eq.s32.totalorder %s23, 3
      %p88 = por %p86, %p87
      %p89 = scmp.ne.s32.totalorder %s78, %s79
      %p90 = scmp.eq.s32.totalorder %s23, 0
      %p91 = por %p89, %p90
      %p92 = scmp.ne.s32.totalorder %s78, %s79
      %p93 = scmp.eq.s32.totalorder %s24, 3
      %p94 = por %p92, %p93
      %p96 = scmp.ne.s32.totalorder %s79, %s95
      %p97 = scmp.eq.s32.totalorder %s24, 0
      %p98 = por %p96, %p97
      %s100 = sadd.s32 %s99, 1
      %p103 = scmp.eq.s32.totalorder %s18, 3
      %p104 = scmp.ne.s32.totalorder %s99, %s101
      %p105 = scmp.eq.s32.totalorder %s18, 0
      %p106 = por %p104, %p105
      %p107 = scmp.ne.s32.totalorder %s99, %s101
      %p108 = scmp.eq.s32.totalorder %s23, 3
      %p109 = por %p107, %p108
      %p110 = scmp.ne.s32.totalorder %s101, %s102
      %p111 = scmp.eq.s32.totalorder %s23, 0
      %p112 = por %p110, %p111
      %p113 = scmp.ne.s32.totalorder %s101, %s102
      %p114 = scmp.eq.s32.totalorder %s24, 3
      %p115 = por %p113, %p114
      %p117 = scmp.ne.s32.totalorder %s102, %s116
      %p118 = scmp.eq.s32.totalorder %s24, 0
      %p119 = por %p117, %p118
      %s121 = sadd.s32 %s120, 1
      %p124 = scmp.eq.s32.totalorder %s18, 3
      %p125 = scmp.ne.s32.totalorder %s120, %s122
      %p126 = scmp.eq.s32.totalorder %s18, 0
      %p127 = por %p125, %p126
      %p128 = scmp.ne.s32.totalorder %s120, %s122
      %p129 = scmp.eq.s32.totalorder %s23, 3
      %p130 = por %p128, %p129
      %p131 = scmp.ne.s32.totalorder %s122, %s123
      %p132 = scmp.eq.s32.totalorder %s23, 0
      %p133 = por %p131, %p132
      %p134 = scmp.ne.s32.totalorder %s122, %s123
      %p135 = scmp.eq.s32.totalorder %s24, 3
      %p136 = por %p134, %p135
      %p138 = scmp.ne.s32.totalorder %s123, %s137
      %p139 = scmp.eq.s32.totalorder %s24, 0
      %p140 = por %p138, %p139
      %s142 = sadd.s32 %s141, 1
      %p145 = scmp.eq.s32.totalorder %s18, 3
      %p146 = scmp.ne.s32.totalorder %s141, %s143
      %p147 = scmp.eq.s32.totalorder %s18, 0
      %p148 = por %p146, %p147
      %p149 = scmp.ne.s32.totalorder %s141, %s143
      %p150 = scmp.eq.s32.totalorder %s23, 3
      %p151 = por %p149, %p150
      %p152 = scmp.ne.s32.totalorder %s143, %s144
      %p153 = scmp.eq.s32.totalorder %s23, 0
      %p154 = por %p152, %p153
      %p155 = scmp.ne.s32.totalorder %s143, %s144
      %p156 = scmp.eq.s32.totalorder %s24, 3
      %p157 = por %p155, %p156
      %p159 = scmp.ne.s32.totalorder %s144, %s158
      %p160 = scmp.eq.s32.totalorder %s24, 0
      %p161 = por %p159, %p160
      %s163 = sadd.s32 %s162, 1
      %p166 = scmp.eq.s32.totalorder %s18, 3
      %p167 = scmp.ne.s32.totalorder %s162, %s164
      %p168 = scmp.eq.s32.totalorder %s18, 0
      %p169 = por %p167, %p168
      %p170 = scmp.ne.s32.totalorder %s162, %s164
      %p171 = scmp.eq.s32.totalorder %s23, 3
      %p172 = por %p170, %p171
      %p173 = scmp.ne.s32.totalorder %s164, %s165
      %p174 = scmp.eq.s32.totalorder %s23, 0
      %p175 = por %p173, %p174
      %p176 = scmp.ne.s32.totalorder %s164, %s165
      %p177 = scmp.eq.s32.totalorder %s24, 3
      %p178 = por %p176, %p177
      %p180 = scmp.ne.s32.totalorder %s165, %s179
      %p181 = scmp.eq.s32.totalorder %s24, 0
      %p182 = por %p180, %p181
      %s183 = ssub.s32 %s18, %s25
      %p184 = scmp.eq.s32.totalorder %s183, 0
      %s186 = sadd.s32 %s185, 1
      %s187 = scalar_select %p184, %s185, %s186
      %p190 = pneg %p184
      %p191 = scmp.eq.s32.totalorder %s18, 3
      %p192 = por %p190, %p191
      %p193 = scmp.ne.s32.totalorder %s185, %s188
      %p194 = scmp.eq.s32.totalorder %s18, 0
      %p195 = por %p193, %p194
      %p196 = scmp.ne.s32.totalorder %s185, %s188
      %p197 = scmp.eq.s32.totalorder %s23, 3
      %p198 = por %p196, %p197
      %p199 = scmp.ne.s32.totalorder %s188, %s189
      %p200 = scmp.eq.s32.totalorder %s23, 0
      %p201 = por %p199, %p200
      %p202 = scmp.ne.s32.totalorder %s188, %s189
      %p203 = scmp.eq.s32.totalorder %s24, 3
      %p204 = por %p202, %p203
      %p206 = scmp.ne.s32.totalorder %s189, %s205
      %p207 = scmp.eq.s32.totalorder %s24, 0
      %p208 = por %p206, %p207
      %p209 = scmp.le.s32.totalorder 1, %s18
      %p210 = scmp.lt.s32.totalorder %s18, 5
      %p211 = pnand %p209, %p210
      %p212 = pneg %p211
      // Predicated region
      $region9: #{tpu_custom_call.1} parent=5 // pred_check
        _
      $region10: #{tpu_custom_call.1} parent=5 // pred_check_branch
        %214 = sbr.rel (%p211) target = $region12
      $region11: #{tpu_custom_call.1} parent=5 // pred_region
        %s215 = ssub.s32 %s18, 1
        // Predicated region
        $region13: #{tpu_custom_call.1} parent=11 // pred_check
          %p216 = pneg %p65
        $region14: #{tpu_custom_call.1} parent=11 // pred_check_branch
          %218 = sbr.rel (%p216) target = $region16
        $region15: #{tpu_custom_call.1} parent=11 // pred_region
          %s220 = ssub.s32 2048, 2048
          %221 = vsyncadd [#allocation3], %s220
          %s222 = sshll.u32 [#allocation2], 4
          %s223 = int_to_ptr.vmem [resolvable:$true] %s222
          %228 = dma.hbm_to_vmem [thread:$0]  %s1, 2048, %s223, [#allocation3], 64, 64, 4
        $region16: #{tpu_custom_call.1} parent=11 // pred_fallthru
          _
        // Predicated region
        $region17: #{tpu_custom_call.1} parent=11 // pred_check
          %p229 = pneg %p112
        $region18: #{tpu_custom_call.1} parent=11 // pred_check_branch
          %231 = sbr.rel (%p229) target = $region20
        $region19: #{tpu_custom_call.1} parent=11 // pred_region
          %s233 = ssub.s32 1024, 1024
          %234 = vsyncadd [#allocation6], %s233
          %s235 = sshll.u32 [#allocation5], 4
          %s236 = int_to_ptr.vmem [resolvable:$true] %s235
          %241 = dma.hbm_to_vmem [thread:$0]  %s3, 1024, %s236, [#allocation6], 64, 64, 4
        $region20: #{tpu_custom_call.1} parent=11 // pred_fallthru
          _
        // Predicated region
        $region21: #{tpu_custom_call.1} parent=11 // pred_check
          %p242 = pneg %p133
        $region22: #{tpu_custom_call.1} parent=11 // pred_check_branch
          %244 = sbr.rel (%p242) target = $region24
        $region23: #{tpu_custom_call.1} parent=11 // pred_region
          _
        $region24: #{tpu_custom_call.1} parent=11 // pred_fallthru
          _
        // Predicated region
        $region25: #{tpu_custom_call.1} parent=11 // pred_check
          %p245 = pneg %p154
        $region26: #{tpu_custom_call.1} parent=11 // pred_check_branch
          %247 = sbr.rel (%p245) target = $region28
        $region27: #{tpu_custom_call.1} parent=11 // pred_region
          _
        $region28: #{tpu_custom_call.1} parent=11 // pred_fallthru
          _
        // Predicated region
        $region29: #{tpu_custom_call.1} parent=11 // pred_check
          %p248 = pneg %p175
        $region30: #{tpu_custom_call.1} parent=11 // pred_check_branch
          %250 = sbr.rel (%p248) target = $region32
        $region31: #{tpu_custom_call.1} parent=11 // pred_region
          %s252 = ssub.s32 2048, 2048
          %253 = vsyncadd [#allocation6], %s252
          %s254 = sshll.u32 [#allocation7], 4
          %s255 = int_to_ptr.vmem [resolvable:$true] %s254
          %260 = dma.hbm_to_vmem [thread:$0]  %s6, 2048, %s255, [#allocation6], 64, 64, 4
        $region32: #{tpu_custom_call.1} parent=11 // pred_fallthru
          _
      $region12: #{tpu_custom_call.1} parent=5 // pred_fallthru
        _
      %p261 = scmp.lt.s32.totalorder %s18, 4
      // Predicated region
      $region33: #{tpu_custom_call.1} parent=5 // pred_check
        %p262 = pneg %p261
      $region34: #{tpu_custom_call.1} parent=5 // pred_check_branch
        %264 = sbr.rel (%p262) target = $region36
      $region35: #{tpu_custom_call.1} parent=5 // pred_region
        // Predicated region
        $region37: #{tpu_custom_call.1} parent=35 // pred_check
          %p265 = pneg %p38
        $region38: #{tpu_custom_call.1} parent=35 // pred_check_branch
          %267 = sbr.rel (%p265) target = $region40
        $region39: #{tpu_custom_call.1} parent=35 // pred_region
          %s268 = smul.u32 16, %s18
          %p269 = scmp.lt.s32.totalorder %s268, 63
          %s270 = scalar_select %p269, %s268, 63
          %s271 = smul.addr %s270, 8
          %s272 = scalar_lea.vmem %s0, %s271
          %s273 = smul.u32 16, %s18
        $region40: #{tpu_custom_call.1} parent=35 // pred_fallthru
          _
        // Predicated region
        $region41: #{tpu_custom_call.1} parent=35 // pred_check
          %p274 = pneg %p85
        $region42: #{tpu_custom_call.1} parent=35 // pred_check_branch
          %276 = sbr.rel (%p274) target = $region44
        $region43: #{tpu_custom_call.1} parent=35 // pred_region
          %s277 = smul.u32 16, %s18
          %p278 = scmp.lt.s32.totalorder %s277, 63
          %s279 = scalar_select %p278, %s277, 63
          %s280 = smul.addr %s279, 4
          %s281 = scalar_lea.vmem %s2, %s280
          %s282 = smul.u32 16, %s18
        $region44: #{tpu_custom_call.1} parent=35 // pred_fallthru
          _
      $region36: #{tpu_custom_call.1} parent=5 // pred_fallthru
        _
      %p283 = scmp.le.s32.totalorder 1, %s18
      %p284 = scmp.lt.s32.totalorder %s18, 5
      %p285 = pnand %p283, %p284
      %p286 = pneg %p285
      // Predicated region
      $region45: #{tpu_custom_call.1} parent=5 // pred_check
        _
      $region46: #{tpu_custom_call.1} parent=5 // pred_check_branch
        %288 = sbr.rel (%p285) target = $region48
      $region47: #{tpu_custom_call.1} parent=5 // pred_region
        %s289 = ssub.s32 %s18, 1
        // Predicated region
        $region49: #{tpu_custom_call.1} parent=47 // pred_check
          %p290 = pneg %p65
        $region50: #{tpu_custom_call.1} parent=47 // pred_check_branch
          %292 = sbr.rel (%p290) target = $region52
        $region51: #{tpu_custom_call.1} parent=47 // pred_region
          %293 = dma.done [#allocation3], 2048
        $region52: #{tpu_custom_call.1} parent=47 // pred_fallthru
          _
        // Predicated region
        $region53: #{tpu_custom_call.1} parent=47 // pred_check
          %p294 = pneg %p112
        $region54: #{tpu_custom_call.1} parent=47 // pred_check_branch
          %296 = sbr.rel (%p294) target = $region56
        $region55: #{tpu_custom_call.1} parent=47 // pred_region
          %297 = dma.done [#allocation6], 1024
        $region56: #{tpu_custom_call.1} parent=47 // pred_fallthru
          _
        // Predicated region
        $region57: #{tpu_custom_call.1} parent=47 // pred_check
          %p298 = pneg %p175
        $region58: #{tpu_custom_call.1} parent=47 // pred_check_branch
          %300 = sbr.rel (%p298) target = $region60
        $region59: #{tpu_custom_call.1} parent=47 // pred_region
          %301 = dma.done [#allocation6], 2048
        $region60: #{tpu_custom_call.1} parent=47 // pred_fallthru
          _
        %s302 = smul.u32 16, %s23
        %p303 = scmp.lt.s32.totalorder %s302, 63
        %s304 = scalar_select %p303, %s302, 63
        %s305 = smul.addr %s304, 8
        %s306 = scalar_lea.vmem %s0, %s305
        %p307 = pneg %p44
        %p308 = pneg %p41
        %p309 = pneg %p65
        %p310 = pneg %p62
        %s311 = smul.u32 16, %s23
        %p312 = scmp.lt.s32.totalorder %s311, 63
        %s313 = scalar_select %p312, %s311, 63
        %s314 = smul.addr %s313, 4
        %s315 = scalar_lea.vmem %s2, %s314
        %p316 = pneg %p91
        %p317 = pneg %p88
        %p318 = pneg %p112
        %p319 = pneg %p109
        %p320 = pneg %p133
        %p321 = pneg %p130
        %p322 = pneg %p154
        %p323 = pneg %p151
        %p324 = pneg %p175
        %p325 = pneg %p172
        %p326 = pneg %p201
        %p327 = pneg %p198
        %s328 = sand.u32 %s188, 1
        %s329 = scalar_lea.sflag [#allocation4], %s328
        %s330 = sand.u32 %s188, 1
        %s331 = smul.addr %s330, 128
        %s332 = scalar_lea.vmem [#allocation8], %s331
        %s333 = smul.u32 16, %s23
        %p334 = scmp.lt.s32.totalorder %s333, 63
        %s335 = scalar_select %p334, %s333, 63
        %s336 = smul.addr %s335, 8
        %s337 = scalar_lea.vmem %s0, %s336
        %s338 = smul.u32 16, %s23
        %s339 = smul.u32 16, %s23
        %p340 = scmp.lt.s32.totalorder %s339, 63
        %s341 = scalar_select %p340, %s339, 63
        %s342 = smul.addr %s341, 4
        %s343 = scalar_lea.vmem %s2, %s342
        %s344 = smul.u32 16, %s23
        %s345 = smul.u32 16, %s23
        %v347 = vld [vmem:[%s337] sm:$0xff]
        %v348 = vld [vmem:[%s337 + $0x8] sm:$0xff]
        %v349 = vld [vmem:[%s337 + $0x10] sm:$0xff]
        %v350 = vld [vmem:[%s337 + $0x18] sm:$0xff]
        %v351 = vld [vmem:[%s337 + $0x20] sm:$0xff]
        %v352 = vld [vmem:[%s337 + $0x28] sm:$0xff]
        %v353 = vld [vmem:[%s337 + $0x30] sm:$0xff]
        %v354 = vld [vmem:[%s337 + $0x38] sm:$0xff]
        %v355 = vld [vmem:[%s337 + $0x40] sm:$0xff]
        %v356 = vld [vmem:[%s337 + $0x48] sm:$0xff]
        %v357 = vld [vmem:[%s337 + $0x50] sm:$0xff]
        %v358 = vld [vmem:[%s337 + $0x58] sm:$0xff]
        %v359 = vld [vmem:[%s337 + $0x60] sm:$0xff]
        %v360 = vld [vmem:[%s337 + $0x68] sm:$0xff]
        %v361 = vld [vmem:[%s337 + $0x70] sm:$0xff]
        %v362 = vld [vmem:[%s337 + $0x78] sm:$0xff]
        %v363 = vlaneseq
        %v364 = vand.u32 %v363, 127
        %v365 = vadd.s32 %v364, 128
        %366 = vset.pattern.permute.xlu0 0
        %367 = vperm.xlu0 %366, %v347
        %v368 = vpop.permute.xlu0 %367
        %369 = vset.pattern.permute.xlu0 0
        %370 = vperm.xlu0 %369, %v348
        %v371 = vpop.permute.xlu0 %370
        %372 = vset.pattern.permute.xlu0 0
        %373 = vperm.xlu0 %372, %v349
        %v374 = vpop.permute.xlu0 %373
        %375 = vset.pattern.permute.xlu0 0
        %376 = vperm.xlu0 %375, %v350
        %v377 = vpop.permute.xlu0 %376
        %378 = vset.pattern.permute.xlu0 0
        %379 = vperm.xlu0 %378, %v351
        %v380 = vpop.permute.xlu0 %379
        %381 = vset.pattern.permute.xlu0 0
        %382 = vperm.xlu0 %381, %v352
        %v383 = vpop.permute.xlu0 %382
        %384 = vset.pattern.permute.xlu0 0
        %385 = vperm.xlu0 %384, %v353
        %v386 = vpop.permute.xlu0 %385
        %387 = vset.pattern.permute.xlu0 0
        %388 = vperm.xlu0 %387, %v354
        %v389 = vpop.permute.xlu0 %388
        %390 = vset.pattern.permute.xlu0 0
        %391 = vperm.xlu0 %390, %v355
        %v392 = vpop.permute.xlu0 %391
        %393 = vset.pattern.permute.xlu0 0
        %394 = vperm.xlu0 %393, %v356
        %v395 = vpop.permute.xlu0 %394
        %396 = vset.pattern.permute.xlu0 0
        %397 = vperm.xlu0 %396, %v357
        %v398 = vpop.permute.xlu0 %397
        %399 = vset.pattern.permute.xlu0 0
        %400 = vperm.xlu0 %399, %v358
        %v401 = vpop.permute.xlu0 %400
        %402 = vset.pattern.permute.xlu0 0
        %403 = vperm.xlu0 %402, %v359
        %v404 = vpop.permute.xlu0 %403
        %405 = vset.pattern.permute.xlu0 0
        %406 = vperm.xlu0 %405, %v360
        %v407 = vpop.permute.xlu0 %406
        %408 = vset.pattern.permute.xlu0 0
        %409 = vperm.xlu0 %408, %v361
        %v410 = vpop.permute.xlu0 %409
        %411 = vset.pattern.permute.xlu0 0
        %412 = vperm.xlu0 %411, %v362
        %v413 = vpop.permute.xlu0 %412
        %vm414 = vcmp.eq.s32.totalorder %v368, %v364
        %vm415 = vcmp.eq.s32.totalorder %v368, %v365
        %vm416 = vcmp.eq.s32.totalorder %v371, %v364
        %vm417 = vcmp.eq.s32.totalorder %v371, %v365
        %vm418 = vcmp.eq.s32.totalorder %v374, %v364
        %vm419 = vcmp.eq.s32.totalorder %v374, %v365
        %vm420 = vcmp.eq.s32.totalorder %v377, %v364
        %vm421 = vcmp.eq.s32.totalorder %v377, %v365
        %vm422 = vcmp.eq.s32.totalorder %v380, %v364
        %vm423 = vcmp.eq.s32.totalorder %v380, %v365
        %vm424 = vcmp.eq.s32.totalorder %v383, %v364
        %vm425 = vcmp.eq.s32.totalorder %v383, %v365
        %vm426 = vcmp.eq.s32.totalorder %v386, %v364
        %vm427 = vcmp.eq.s32.totalorder %v386, %v365
        %vm428 = vcmp.eq.s32.totalorder %v389, %v364
        %vm429 = vcmp.eq.s32.totalorder %v389, %v365
        %vm430 = vcmp.eq.s32.totalorder %v392, %v364
        %vm431 = vcmp.eq.s32.totalorder %v392, %v365
        %vm432 = vcmp.eq.s32.totalorder %v395, %v364
        %vm433 = vcmp.eq.s32.totalorder %v395, %v365
        %vm434 = vcmp.eq.s32.totalorder %v398, %v364
        %vm435 = vcmp.eq.s32.totalorder %v398, %v365
        %vm436 = vcmp.eq.s32.totalorder %v401, %v364
        %vm437 = vcmp.eq.s32.totalorder %v401, %v365
        %vm438 = vcmp.eq.s32.totalorder %v404, %v364
        %vm439 = vcmp.eq.s32.totalorder %v404, %v365
        %vm440 = vcmp.eq.s32.totalorder %v407, %v364
        %vm441 = vcmp.eq.s32.totalorder %v407, %v365
        %vm442 = vcmp.eq.s32.totalorder %v410, %v364
        %vm443 = vcmp.eq.s32.totalorder %v410, %v365
        %vm444 = vcmp.eq.s32.totalorder %v413, %v364
        %vm445 = vcmp.eq.s32.totalorder %v413, %v365
        %v446 = vsel %vm414, 1, 0
        %v447 = vsel %vm415, 1, 0
        %v448 = vsel %vm416, 1, 0
        %v449 = vsel %vm417, 1, 0
        %v450 = vsel %vm418, 1, 0
        %v451 = vsel %vm419, 1, 0
        %v452 = vsel %vm420, 1, 0
        %v453 = vsel %vm421, 1, 0
        %v454 = vsel %vm422, 1, 0
        %v455 = vsel %vm423, 1, 0
        %v456 = vsel %vm424, 1, 0
        %v457 = vsel %vm425, 1, 0
        %v458 = vsel %vm426, 1, 0
        %v459 = vsel %vm427, 1, 0
        %v460 = vsel %vm428, 1, 0
        %v461 = vsel %vm429, 1, 0
        %v462 = vsel %vm430, 1, 0
        %v463 = vsel %vm431, 1, 0
        %v464 = vsel %vm432, 1, 0
        %v465 = vsel %vm433, 1, 0
        %v466 = vsel %vm434, 1, 0
        %v467 = vsel %vm435, 1, 0
        %v468 = vsel %vm436, 1, 0
        %v469 = vsel %vm437, 1, 0
        %v470 = vsel %vm438, 1, 0
        %v471 = vsel %vm439, 1, 0
        %v472 = vsel %vm440, 1, 0
        %v473 = vsel %vm441, 1, 0
        %v474 = vsel %vm442, 1, 0
        %v475 = vsel %vm443, 1, 0
        %v476 = vsel %vm444, 1, 0
        %v477 = vsel %vm445, 1, 0
        %v478 = vcvt.s32.f32 %v446
        %v479 = vcvt.s32.f32 %v447
        %v480 = vcvt.s32.f32 %v448
        %v481 = vcvt.s32.f32 %v449
        %v482 = vcvt.s32.f32 %v450
        %v483 = vcvt.s32.f32 %v451
        %v484 = vcvt.s32.f32 %v452
        %v485 = vcvt.s32.f32 %v453
        %v486 = vcvt.s32.f32 %v454
        %v487 = vcvt.s32.f32 %v455
        %v488 = vcvt.s32.f32 %v456
        %v489 = vcvt.s32.f32 %v457
        %v490 = vcvt.s32.f32 %v458
        %v491 = vcvt.s32.f32 %v459
        %v492 = vcvt.s32.f32 %v460
        %v493 = vcvt.s32.f32 %v461
        %v494 = vcvt.s32.f32 %v462
        %v495 = vcvt.s32.f32 %v463
        %v496 = vcvt.s32.f32 %v464
        %v497 = vcvt.s32.f32 %v465
        %v498 = vcvt.s32.f32 %v466
        %v499 = vcvt.s32.f32 %v467
        %v500 = vcvt.s32.f32 %v468
        %v501 = vcvt.s32.f32 %v469
        %v502 = vcvt.s32.f32 %v470
        %v503 = vcvt.s32.f32 %v471
        %v504 = vcvt.s32.f32 %v472
        %v505 = vcvt.s32.f32 %v473
        %v506 = vcvt.s32.f32 %v474
        %v507 = vcvt.s32.f32 %v475
        %v508 = vcvt.s32.f32 %v476
        %v509 = vcvt.s32.f32 %v477
        %v510 = vpack.c.bf16 %v480, %v478
        %v511 = vpack.c.bf16 %v481, %v479
        %v512 = vpack.c.bf16 %v484, %v482
        %v513 = vpack.c.bf16 %v485, %v483
        %v514 = vpack.c.bf16 %v488, %v486
        %v515 = vpack.c.bf16 %v489, %v487
        %v516 = vpack.c.bf16 %v492, %v490
        %v517 = vpack.c.bf16 %v493, %v491
        %v518 = vpack.c.bf16 %v496, %v494
        %v519 = vpack.c.bf16 %v497, %v495
        %v520 = vpack.c.bf16 %v500, %v498
        %v521 = vpack.c.bf16 %v501, %v499
        %v522 = vpack.c.bf16 %v504, %v502
        %v523 = vpack.c.bf16 %v505, %v503
        %v524 = vpack.c.bf16 %v508, %v506
        %v525 = vpack.c.bf16 %v509, %v507
        %v526 = vld [vmem:[#allocation2] sm:$0xf]
        %v527 = vld [vmem:[#allocation2 + $0x4] sm:$0xf]
        %v528 = vld [vmem:[#allocation2 + $0x8] sm:$0xf]
        %v529 = vld [vmem:[#allocation2 + $0xc] sm:$0xf]
        %v530 = vld [vmem:[#allocation2 + $0x10] sm:$0xf]
        %v531 = vld [vmem:[#allocation2 + $0x14] sm:$0xf]
        %v532 = vld [vmem:[#allocation2 + $0x18] sm:$0xf]
        %v533 = vld [vmem:[#allocation2 + $0x1c] sm:$0xf]
        %v534 = vld [vmem:[#allocation2 + $0x20] sm:$0xf]
        %v535 = vld [vmem:[#allocation2 + $0x24] sm:$0xf]
        %v536 = vld [vmem:[#allocation2 + $0x28] sm:$0xf]
        %v537 = vld [vmem:[#allocation2 + $0x2c] sm:$0xf]
        %v538 = vld [vmem:[#allocation2 + $0x30] sm:$0xf]
        %v539 = vld [vmem:[#allocation2 + $0x34] sm:$0xf]
        %v540 = vld [vmem:[#allocation2 + $0x38] sm:$0xf]
        %v541 = vld [vmem:[#allocation2 + $0x3c] sm:$0xf]
        %v542 = vld [vmem:[#allocation2 + $0x40] sm:$0xf]
        %v543 = vld [vmem:[#allocation2 + $0x44] sm:$0xf]
        %v544 = vld [vmem:[#allocation2 + $0x48] sm:$0xf]
        %v545 = vld [vmem:[#allocation2 + $0x4c] sm:$0xf]
        %v546 = vld [vmem:[#allocation2 + $0x50] sm:$0xf]
        %v547 = vld [vmem:[#allocation2 + $0x54] sm:$0xf]
        %v548 = vld [vmem:[#allocation2 + $0x58] sm:$0xf]
        %v549 = vld [vmem:[#allocation2 + $0x5c] sm:$0xf]
        %v550 = vld [vmem:[#allocation2 + $0x60] sm:$0xf]
        %v551 = vld [vmem:[#allocation2 + $0x64] sm:$0xf]
        %v552 = vld [vmem:[#allocation2 + $0x68] sm:$0xf]
        %v553 = vld [vmem:[#allocation2 + $0x6c] sm:$0xf]
        %v554 = vld [vmem:[#allocation2 + $0x70] sm:$0xf]
        %v555 = vld [vmem:[#allocation2 + $0x74] sm:$0xf]
        %v556 = vld [vmem:[#allocation2 + $0x78] sm:$0xf]
        %v557 = vld [vmem:[#allocation2 + $0x7c] sm:$0xf]
        %v558 = vld [vmem:[%s343] sm:$0xf]
        %v559 = vld [vmem:[%s343 + $0x4] sm:$0xf]
        %v560 = vld [vmem:[%s343 + $0x8] sm:$0xf]
        %v561 = vld [vmem:[%s343 + $0xc] sm:$0xf]
        %v562 = vld [vmem:[%s343 + $0x10] sm:$0xf]
        %v563 = vld [vmem:[%s343 + $0x14] sm:$0xf]
        %v564 = vld [vmem:[%s343 + $0x18] sm:$0xf]
        %v565 = vld [vmem:[%s343 + $0x1c] sm:$0xf]
        %v566 = vld [vmem:[%s343 + $0x20] sm:$0xf]
        %v567 = vld [vmem:[%s343 + $0x24] sm:$0xf]
        %v568 = vld [vmem:[%s343 + $0x28] sm:$0xf]
        %v569 = vld [vmem:[%s343 + $0x2c] sm:$0xf]
        %v570 = vld [vmem:[%s343 + $0x30] sm:$0xf]
        %v571 = vld [vmem:[%s343 + $0x34] sm:$0xf]
        %v572 = vld [vmem:[%s343 + $0x38] sm:$0xf]
        %v573 = vld [vmem:[%s343 + $0x3c] sm:$0xf]
        %v574 = vld [vmem:[#allocation5] sm:$0xf]
        %v575 = vld [vmem:[#allocation5 + $0x4] sm:$0xf]
        %v576 = vld [vmem:[#allocation5 + $0x8] sm:$0xf]
        %v577 = vld [vmem:[#allocation5 + $0xc] sm:$0xf]
        %v578 = vld [vmem:[#allocation5 + $0x10] sm:$0xf]
        %v579 = vld [vmem:[#allocation5 + $0x14] sm:$0xf]
        %v580 = vld [vmem:[#allocation5 + $0x18] sm:$0xf]
        %v581 = vld [vmem:[#allocation5 + $0x1c] sm:$0xf]
        %v582 = vld [vmem:[#allocation5 + $0x20] sm:$0xf]
        %v583 = vld [vmem:[#allocation5 + $0x24] sm:$0xf]
        %v584 = vld [vmem:[#allocation5 + $0x28] sm:$0xf]
        %v585 = vld [vmem:[#allocation5 + $0x2c] sm:$0xf]
        %v586 = vld [vmem:[#allocation5 + $0x30] sm:$0xf]
        %v587 = vld [vmem:[#allocation5 + $0x34] sm:$0xf]
        %v588 = vld [vmem:[#allocation5 + $0x38] sm:$0xf]
        %v589 = vld [vmem:[#allocation5 + $0x3c] sm:$0xf]
        %v606 = vunpack.c.l.b16 %v558
        %v607 = vunpack.c.l.b16 %v559
        %v608 = vunpack.c.l.b16 %v560
        %v609 = vunpack.c.l.b16 %v561
        %v610 = vunpack.c.l.b16 %v562
        %v611 = vunpack.c.l.b16 %v563
        %v612 = vunpack.c.l.b16 %v564
        %v613 = vunpack.c.l.b16 %v565
        %v614 = vunpack.c.l.b16 %v566
        %v615 = vunpack.c.l.b16 %v567
        %v616 = vunpack.c.l.b16 %v568
        %v617 = vunpack.c.l.b16 %v569
        %v618 = vunpack.c.l.b16 %v570
        %v619 = vunpack.c.l.b16 %v571
        %v620 = vunpack.c.l.b16 %v572
        %v621 = vunpack.c.l.b16 %v573
        %v622 = vpack.c.b16 %v607, %v606
        %v623 = vpack.c.b16 %v609, %v608
        %v624 = vpack.c.b16 %v611, %v610
        %v625 = vpack.c.b16 %v613, %v612
        %v626 = vpack.c.b16 %v615, %v614
        %v627 = vpack.c.b16 %v617, %v616
        %v628 = vpack.c.b16 %v619, %v618
        %v629 = vpack.c.b16 %v621, %v620
        %v654 = vunpack.c.l.b16 %v574
        %v655 = vunpack.c.l.b16 %v575
        %v656 = vunpack.c.l.b16 %v576
        %v657 = vunpack.c.l.b16 %v577
        %v658 = vunpack.c.l.b16 %v578
        %v659 = vunpack.c.l.b16 %v579
        %v660 = vunpack.c.l.b16 %v580
        %v661 = vunpack.c.l.b16 %v581
        %v662 = vunpack.c.l.b16 %v582
        %v663 = vunpack.c.l.b16 %v583
        %v664 = vunpack.c.l.b16 %v584
        %v665 = vunpack.c.l.b16 %v585
        %v666 = vunpack.c.l.b16 %v586
        %v667 = vunpack.c.l.b16 %v587
        %v668 = vunpack.c.l.b16 %v588
        %v669 = vunpack.c.l.b16 %v589
        %v670 = vpack.c.b16 %v655, %v654
        %v671 = vpack.c.b16 %v657, %v656
        %v672 = vpack.c.b16 %v659, %v658
        %v673 = vpack.c.b16 %v661, %v660
        %v674 = vpack.c.b16 %v663, %v662
        %v675 = vpack.c.b16 %v665, %v664
        %v676 = vpack.c.b16 %v667, %v666
        %v677 = vpack.c.b16 %v669, %v668
        %686 = vmatprep.subr.bf16.mxu0 0
        %687 = vmatpush1.bf16.msra.mxu0 %v677
        %688 = vmatprep.subr.bf16.mxu0 0
        %689 = vmatpush1.bf16.msra.mxu0 %v676
        %690 = vmatprep.subr.bf16.mxu0 0
        %691 = vmatpush1.bf16.msra.mxu0 %v675
        %692 = vmatprep.subr.bf16.mxu0 0
        %693 = vmatpush1.bf16.msra.mxu0 %v674
        %694 = vmatprep.subr.bf16.mxu0 0
        %695 = vmatpush1.bf16.msra.mxu0 %v673
        %696 = vmatprep.subr.bf16.mxu0 0
        %697 = vmatpush1.bf16.msra.mxu0 %v672
        %698 = vmatprep.subr.bf16.mxu0 0
        %699 = vmatpush1.bf16.msra.mxu0 %v671
        %700 = vmatprep.subr.bf16.mxu0 0
        %701 = vmatpush1.bf16.msra.mxu0 %v670
        %702 = vmatprep.subr.bf16.mxu0 0
        %703 = vmatpush2.bf16.msra.mxu0 0
        %704 = vmatprep.subr.bf16.mxu0 0
        %705 = vmatpush2.bf16.msra.mxu0 0
        %706 = vmatprep.subr.bf16.mxu0 0
        %707 = vmatpush2.bf16.msra.mxu0 0
        %708 = vmatprep.subr.bf16.mxu0 0
        %709 = vmatpush2.bf16.msra.mxu0 0
        %710 = vmatprep.subr.bf16.mxu0 0
        %711 = vmatpush2.bf16.msra.mxu0 0
        %712 = vmatprep.subr.bf16.mxu0 0
        %713 = vmatpush2.bf16.msra.mxu0 0
        %714 = vmatprep.subr.bf16.mxu0 0
        %715 = vmatpush2.bf16.msra.mxu0 0
        %716 = vmatprep.subr.bf16.mxu0 0
        %717 = vmatpush2.bf16.msra.mxu0 0
        %718 = vmatprep.mubr.bf16.mxu0 0
        %719 = vmatmul.mubr.bf16.gmra.mxu0 %v622
        %v720 = vpop.f32.mrf.mxu0
        %v721 = vadd.f32 0.0, %v720
        %v722 = vpop.f32.mrf.mxu0
        %v723 = vpop.f32.mrf.mxu0
        %v724 = vadd.f32 0.0, %v723
        %v725 = vpop.f32.mrf.mxu0
        %726 = vmatprep.mubr.bf16.mxu0 0
        %727 = vmatmul.mubr.bf16.gmra.mxu0 %v623
        %v728 = vpop.f32.mrf.mxu0
        %v729 = vadd.f32 0.0, %v728
        %v730 = vpop.f32.mrf.mxu0
        %v731 = vpop.f32.mrf.mxu0
        %v732 = vadd.f32 0.0, %v731
        %v733 = vpop.f32.mrf.mxu0
        %734 = vmatprep.mubr.bf16.mxu0 0
        %735 = vmatmul.mubr.bf16.gmra.mxu0 %v624
        %v736 = vpop.f32.mrf.mxu0
        %v737 = vadd.f32 0.0, %v736
        %v738 = vpop.f32.mrf.mxu0
        %v739 = vpop.f32.mrf.mxu0
        %v740 = vadd.f32 0.0, %v739
        %v741 = vpop.f32.mrf.mxu0
        %742 = vmatprep.mubr.bf16.mxu0 0
        %743 = vmatmul.mubr.bf16.gmra.mxu0 %v625
        %v744 = vpop.f32.mrf.mxu0
        %v745 = vadd.f32 0.0, %v744
        %v746 = vpop.f32.mrf.mxu0
        %v747 = vpop.f32.mrf.mxu0
        %v748 = vadd.f32 0.0, %v747
        %v749 = vpop.f32.mrf.mxu0
        %750 = vmatprep.mubr.bf16.mxu0 0
        %751 = vmatmul.mubr.bf16.gmra.mxu0 %v626
        %v752 = vpop.f32.mrf.mxu0
        %v753 = vadd.f32 0.0, %v752
        %v754 = vpop.f32.mrf.mxu0
        %v755 = vpop.f32.mrf.mxu0
        %v756 = vadd.f32 0.0, %v755
        %v757 = vpop.f32.mrf.mxu0
        %758 = vmatprep.mubr.bf16.mxu0 0
        %759 = vmatmul.mubr.bf16.gmra.mxu0 %v627
        %v760 = vpop.f32.mrf.mxu0
        %v761 = vadd.f32 0.0, %v760
        %v762 = vpop.f32.mrf.mxu0
        %v763 = vpop.f32.mrf.mxu0
        %v764 = vadd.f32 0.0, %v763
        %v765 = vpop.f32.mrf.mxu0
        %766 = vmatprep.mubr.bf16.mxu0 0
        %767 = vmatmul.mubr.bf16.gmra.mxu0 %v628
        %v768 = vpop.f32.mrf.mxu0
        %v769 = vadd.f32 0.0, %v768
        %v770 = vpop.f32.mrf.mxu0
        %v771 = vpop.f32.mrf.mxu0
        %v772 = vadd.f32 0.0, %v771
        %v773 = vpop.f32.mrf.mxu0
        %774 = vmatprep.mubr.bf16.mxu0 0
        %775 = vmatmul.mubr.bf16.gmra.mxu0 %v629
        %v776 = vpop.f32.mrf.mxu0
        %v777 = vadd.f32 0.0, %v776
        %v778 = vpop.f32.mrf.mxu0
        %v779 = vpop.f32.mrf.mxu0
        %v780 = vadd.f32 0.0, %v779
        %v781 = vpop.f32.mrf.mxu0
        %782 = vdwg.mxu0
        %v815 = vunpack.c.l.b16 %v526
        %v816 = vunpack.c.l.b16 %v527
        %v817 = vunpack.c.l.b16 %v528
        %v818 = vunpack.c.l.b16 %v529
        %v819 = vunpack.c.l.b16 %v530
        %v820 = vunpack.c.l.b16 %v531
        %v821 = vunpack.c.l.b16 %v532
        %v822 = vunpack.c.l.b16 %v533
        %v823 = vunpack.c.l.b16 %v534
        %v824 = vunpack.c.l.b16 %v535
        %v825 = vunpack.c.l.b16 %v536
        %v826 = vunpack.c.l.b16 %v537
        %v827 = vunpack.c.l.b16 %v538
        %v828 = vunpack.c.l.b16 %v539
        %v829 = vunpack.c.l.b16 %v540
        %v830 = vunpack.c.l.b16 %v541
        %v831 = vunpack.c.l.b16 %v542
        %v832 = vunpack.c.l.b16 %v543
        %v833 = vunpack.c.l.b16 %v544
        %v834 = vunpack.c.l.b16 %v545
        %v835 = vunpack.c.l.b16 %v546
        %v836 = vunpack.c.l.b16 %v547
        %v837 = vunpack.c.l.b16 %v548
        %v838 = vunpack.c.l.b16 %v549
        %v839 = vunpack.c.l.b16 %v550
        %v840 = vunpack.c.l.b16 %v551
        %v841 = vunpack.c.l.b16 %v552
        %v842 = vunpack.c.l.b16 %v553
        %v843 = vunpack.c.l.b16 %v554
        %v844 = vunpack.c.l.b16 %v555
        %v845 = vunpack.c.l.b16 %v556
        %v846 = vunpack.c.l.b16 %v557
        %v847 = vpack.c.b16 %v816, %v815
        %v848 = vpack.c.b16 %v818, %v817
        %v849 = vpack.c.b16 %v820, %v819
        %v850 = vpack.c.b16 %v822, %v821
        %v851 = vpack.c.b16 %v824, %v823
        %v852 = vpack.c.b16 %v826, %v825
        %v853 = vpack.c.b16 %v828, %v827
        %v854 = vpack.c.b16 %v830, %v829
        %v855 = vpack.c.b16 %v832, %v831
        %v856 = vpack.c.b16 %v834, %v833
        %v857 = vpack.c.b16 %v836, %v835
        %v858 = vpack.c.b16 %v838, %v837
        %v859 = vpack.c.b16 %v840, %v839
        %v860 = vpack.c.b16 %v842, %v841
        %v861 = vpack.c.b16 %v844, %v843
        %v862 = vpack.c.b16 %v846, %v845
        %879 = vmatprep.subr.bf16.mxu0 0
        %880 = vmatpush1.bf16.msra.mxu0 %v854
        %881 = vmatprep.subr.bf16.mxu0 0
        %882 = vmatpush1.bf16.msra.mxu0 %v853
        %883 = vmatprep.subr.bf16.mxu0 0
        %884 = vmatpush1.bf16.msra.mxu0 %v852
        %885 = vmatprep.subr.bf16.mxu0 0
        %886 = vmatpush1.bf16.msra.mxu0 %v851
        %887 = vmatprep.subr.bf16.mxu0 0
        %888 = vmatpush1.bf16.msra.mxu0 %v850
        %889 = vmatprep.subr.bf16.mxu0 0
        %890 = vmatpush1.bf16.msra.mxu0 %v849
        %891 = vmatprep.subr.bf16.mxu0 0
        %892 = vmatpush1.bf16.msra.mxu0 %v848
        %893 = vmatprep.subr.bf16.mxu0 0
        %894 = vmatpush1.bf16.msra.mxu0 %v847
        %895 = vmatprep.subr.bf16.mxu0 0
        %896 = vmatpush2.bf16.msra.mxu0 %v862
        %897 = vmatprep.subr.bf16.mxu0 0
        %898 = vmatpush2.bf16.msra.mxu0 %v861
        %899 = vmatprep.subr.bf16.mxu0 0
        %900 = vmatpush2.bf16.msra.mxu0 %v860
        %901 = vmatprep.subr.bf16.mxu0 0
        %902 = vmatpush2.bf16.msra.mxu0 %v859
        %903 = vmatprep.subr.bf16.mxu0 0
        %904 = vmatpush2.bf16.msra.mxu0 %v858
        %905 = vmatprep.subr.bf16.mxu0 0
        %906 = vmatpush2.bf16.msra.mxu0 %v857
        %907 = vmatprep.subr.bf16.mxu0 0
        %908 = vmatpush2.bf16.msra.mxu0 %v856
        %909 = vmatprep.subr.bf16.mxu0 0
        %910 = vmatpush2.bf16.msra.mxu0 %v855
        %911 = vmatprep.mubr.bf16.mxu0 %v511
        %912 = vmatmul.mubr.bf16.gmra.mxu0 %v510
        %v913 = vpop.f32.mrf.mxu0
        %v914 = vadd.f32 %v721, %v913
        %v915 = vpop.f32.mrf.mxu0
        %v916 = vpop.f32.mrf.mxu0
        %v917 = vadd.f32 %v724, %v916
        %v918 = vpop.f32.mrf.mxu0
        %919 = vmatprep.mubr.bf16.mxu0 %v513
        %920 = vmatmul.mubr.bf16.gmra.mxu0 %v512
        %v921 = vpop.f32.mrf.mxu0
        %v922 = vadd.f32 %v729, %v921
        %v923 = vpop.f32.mrf.mxu0
        %v924 = vpop.f32.mrf.mxu0
        %v925 = vadd.f32 %v732, %v924
        %v926 = vpop.f32.mrf.mxu0
        %927 = vmatprep.mubr.bf16.mxu0 %v515
        %928 = vmatmul.mubr.bf16.gmra.mxu0 %v514
        %v929 = vpop.f32.mrf.mxu0
        %v930 = vadd.f32 %v737, %v929
        %v931 = vpop.f32.mrf.mxu0
        %v932 = vpop.f32.mrf.mxu0
        %v933 = vadd.f32 %v740, %v932
        %v934 = vpop.f32.mrf.mxu0
        %935 = vmatprep.mubr.bf16.mxu0 %v517
        %936 = vmatmul.mubr.bf16.gmra.mxu0 %v516
        %v937 = vpop.f32.mrf.mxu0
        %v938 = vadd.f32 %v745, %v937
        %v939 = vpop.f32.mrf.mxu0
        %v940 = vpop.f32.mrf.mxu0
        %v941 = vadd.f32 %v748, %v940
        %v942 = vpop.f32.mrf.mxu0
        %943 = vmatprep.mubr.bf16.mxu0 %v519
        %944 = vmatmul.mubr.bf16.gmra.mxu0 %v518
        %v945 = vpop.f32.mrf.mxu0
        %v946 = vadd.f32 %v753, %v945
        %v947 = vpop.f32.mrf.mxu0
        %v948 = vpop.f32.mrf.mxu0
        %v949 = vadd.f32 %v756, %v948
        %v950 = vpop.f32.mrf.mxu0
        %951 = vmatprep.mubr.bf16.mxu0 %v521
        %952 = vmatmul.mubr.bf16.gmra.mxu0 %v520
        %v953 = vpop.f32.mrf.mxu0
        %v954 = vadd.f32 %v761, %v953
        %v955 = vpop.f32.mrf.mxu0
        %v956 = vpop.f32.mrf.mxu0
        %v957 = vadd.f32 %v764, %v956
        %v958 = vpop.f32.mrf.mxu0
        %959 = vmatprep.mubr.bf16.mxu0 %v523
        %960 = vmatmul.mubr.bf16.gmra.mxu0 %v522
        %v961 = vpop.f32.mrf.mxu0
        %v962 = vadd.f32 %v769, %v961
        %v963 = vpop.f32.mrf.mxu0
        %v964 = vpop.f32.mrf.mxu0
        %v965 = vadd.f32 %v772, %v964
        %v966 = vpop.f32.mrf.mxu0
        %967 = vmatprep.mubr.bf16.mxu0 %v525
        %968 = vmatmul.mubr.bf16.gmra.mxu0 %v524
        %v969 = vpop.f32.mrf.mxu0
        %v970 = vadd.f32 %v777, %v969
        %v971 = vpop.f32.mrf.mxu0
        %v972 = vpop.f32.mrf.mxu0
        %v973 = vadd.f32 %v780, %v972
        %v974 = vpop.f32.mrf.mxu0
        %975 = vdwg.mxu0
        %v976 = vld [vmem:[%s4] sm:$0x1]
        %v977 = vmul.f32 %v914, %v914
        %v978 = vmul.f32 %v917, %v917
        %v979 = vmul.f32 %v922, %v922
        %v980 = vmul.f32 %v925, %v925
        %v981 = vmul.f32 %v930, %v930
        %v982 = vmul.f32 %v933, %v933
        %v983 = vmul.f32 %v938, %v938
        %v984 = vmul.f32 %v941, %v941
        %v985 = vmul.f32 %v946, %v946
        %v986 = vmul.f32 %v949, %v949
        %v987 = vmul.f32 %v954, %v954
        %v988 = vmul.f32 %v957, %v957
        %v989 = vmul.f32 %v962, %v962
        %v990 = vmul.f32 %v965, %v965
        %v991 = vmul.f32 %v970, %v970
        %v992 = vmul.f32 %v973, %v973
        %993 = vadd.xlane.f32.xlu0 %v977
        %v994 = vpop.xlane.xlu0 %993
        %995 = vadd.xlane.f32.xlu0 %v978
        %v996 = vpop.xlane.xlu0 %995
        %997 = vadd.xlane.f32.xlu0 %v979
        %v998 = vpop.xlane.xlu0 %997
        %999 = vadd.xlane.f32.xlu0 %v980
        %v1000 = vpop.xlane.xlu0 %999
        %1001 = vadd.xlane.f32.xlu0 %v981
        %v1002 = vpop.xlane.xlu0 %1001
        %1003 = vadd.xlane.f32.xlu0 %v982
        %v1004 = vpop.xlane.xlu0 %1003
        %1005 = vadd.xlane.f32.xlu0 %v983
        %v1006 = vpop.xlane.xlu0 %1005
        %1007 = vadd.xlane.f32.xlu0 %v984
        %v1008 = vpop.xlane.xlu0 %1007
        %1009 = vadd.xlane.f32.xlu0 %v985
        %v1010 = vpop.xlane.xlu0 %1009
        %1011 = vadd.xlane.f32.xlu0 %v986
        %v1012 = vpop.xlane.xlu0 %1011
        %1013 = vadd.xlane.f32.xlu0 %v987
        %v1014 = vpop.xlane.xlu0 %1013
        %1015 = vadd.xlane.f32.xlu0 %v988
        %v1016 = vpop.xlane.xlu0 %1015
        %1017 = vadd.xlane.f32.xlu0 %v989
        %v1018 = vpop.xlane.xlu0 %1017
        %1019 = vadd.xlane.f32.xlu0 %v990
        %v1020 = vpop.xlane.xlu0 %1019
        %1021 = vadd.xlane.f32.xlu0 %v991
        %v1022 = vpop.xlane.xlu0 %1021
        %1023 = vadd.xlane.f32.xlu0 %v992
        %v1024 = vpop.xlane.xlu0 %1023
        %v1025 = vrcp.pop 128.0
        %v1026 = vmul.f32 %v994, %v1025
        %v1027 = vmul.f32 %v996, %v1025
        %v1028 = vmul.f32 %v998, %v1025
        %v1029 = vmul.f32 %v1000, %v1025
        %v1030 = vmul.f32 %v1002, %v1025
        %v1031 = vmul.f32 %v1004, %v1025
        %v1032 = vmul.f32 %v1006, %v1025
        %v1033 = vmul.f32 %v1008, %v1025
        %v1034 = vmul.f32 %v1010, %v1025
        %v1035 = vmul.f32 %v1012, %v1025
        %v1036 = vmul.f32 %v1014, %v1025
        %v1037 = vmul.f32 %v1016, %v1025
        %v1038 = vmul.f32 %v1018, %v1025
        %v1039 = vmul.f32 %v1020, %v1025
        %v1040 = vmul.f32 %v1022, %v1025
        %v1041 = vmul.f32 %v1024, %v1025
        %v1042 = vadd.f32 %v1026, 1e-06
        %v1043 = vadd.f32 %v1027, 1e-06
        %v1044 = vadd.f32 %v1028, 1e-06
        %v1045 = vadd.f32 %v1029, 1e-06
        %v1046 = vadd.f32 %v1030, 1e-06
        %v1047 = vadd.f32 %v1031, 1e-06
        %v1048 = vadd.f32 %v1032, 1e-06
        %v1049 = vadd.f32 %v1033, 1e-06
        %v1050 = vadd.f32 %v1034, 1e-06
        %v1051 = vadd.f32 %v1035, 1e-06
        %v1052 = vadd.f32 %v1036, 1e-06
        %v1053 = vadd.f32 %v1037, 1e-06
        %v1054 = vadd.f32 %v1038, 1e-06
        %v1055 = vadd.f32 %v1039, 1e-06
        %v1056 = vadd.f32 %v1040, 1e-06
        %v1057 = vadd.f32 %v1041, 1e-06
        %v1058 = vrsqrt.pop %v1042
        %v1059 = vrsqrt.pop %v1043
        %v1060 = vrsqrt.pop %v1044
        %v1061 = vrsqrt.pop %v1045
        %v1062 = vrsqrt.pop %v1046
        %v1063 = vrsqrt.pop %v1047
        %v1064 = vrsqrt.pop %v1048
        %v1065 = vrsqrt.pop %v1049
        %v1066 = vrsqrt.pop %v1050
        %v1067 = vrsqrt.pop %v1051
        %v1068 = vrsqrt.pop %v1052
        %v1069 = vrsqrt.pop %v1053
        %v1070 = vrsqrt.pop %v1054
        %v1071 = vrsqrt.pop %v1055
        %v1072 = vrsqrt.pop %v1056
        %v1073 = vrsqrt.pop %v1057
        %v1074 = vmul.f32 %v914, %v1058
        %v1075 = vmul.f32 %v917, %v1059
        %v1076 = vmul.f32 %v922, %v1060
        %v1077 = vmul.f32 %v925, %v1061
        %v1078 = vmul.f32 %v930, %v1062
        %v1079 = vmul.f32 %v933, %v1063
        %v1080 = vmul.f32 %v938, %v1064
        %v1081 = vmul.f32 %v941, %v1065
        %v1082 = vmul.f32 %v946, %v1066
        %v1083 = vmul.f32 %v949, %v1067
        %v1084 = vmul.f32 %v954, %v1068
        %v1085 = vmul.f32 %v957, %v1069
        %v1086 = vmul.f32 %v962, %v1070
        %v1087 = vmul.f32 %v965, %v1071
        %v1088 = vmul.f32 %v970, %v1072
        %v1089 = vmul.f32 %v973, %v1073
        %v1091 = vlaneseq
        %v1092 = vshrl.u32 %v1091, 7
        %v1093 = vsub.s32 0, %v1092
        %v1094 = vrot.slane %v976, %v1093
        %v1096 = vmul.f32 %v1074, %v1094
        %v1097 = vmul.f32 %v1075, %v1094
        %v1098 = vmul.f32 %v1076, %v1094
        %v1099 = vmul.f32 %v1077, %v1094
        %v1100 = vmul.f32 %v1078, %v1094
        %v1101 = vmul.f32 %v1079, %v1094
        %v1102 = vmul.f32 %v1080, %v1094
        %v1103 = vmul.f32 %v1081, %v1094
        %v1104 = vmul.f32 %v1082, %v1094
        %v1105 = vmul.f32 %v1083, %v1094
        %v1106 = vmul.f32 %v1084, %v1094
        %v1107 = vmul.f32 %v1085, %v1094
        %v1108 = vmul.f32 %v1086, %v1094
        %v1109 = vmul.f32 %v1087, %v1094
        %v1110 = vmul.f32 %v1088, %v1094
        %v1111 = vmul.f32 %v1089, %v1094
        %v1112 = vpack.c.bf16 %v1097, %v1096
        %v1113 = vpack.c.bf16 %v1099, %v1098
        %v1114 = vpack.c.bf16 %v1101, %v1100
        %v1115 = vpack.c.bf16 %v1103, %v1102
        %v1116 = vpack.c.bf16 %v1105, %v1104
        %v1117 = vpack.c.bf16 %v1107, %v1106
        %v1118 = vpack.c.bf16 %v1109, %v1108
        %v1119 = vpack.c.bf16 %v1111, %v1110
        %v1120 = vld [vmem:[%s5] sm:$0xff]
        %v1121 = vld [vmem:[%s5 + $0x8] sm:$0xff]
        %v1122 = vld [vmem:[%s5 + $0x10] sm:$0xff]
        %v1123 = vld [vmem:[%s5 + $0x18] sm:$0xff]
        %v1124 = vld [vmem:[%s5 + $0x20] sm:$0xff]
        %v1125 = vld [vmem:[%s5 + $0x28] sm:$0xff]
        %v1126 = vld [vmem:[%s5 + $0x30] sm:$0xff]
        %v1127 = vld [vmem:[%s5 + $0x38] sm:$0xff]
        %v1128 = vld [vmem:[%s5 + $0x40] sm:$0xff]
        %v1129 = vld [vmem:[%s5 + $0x48] sm:$0xff]
        %v1130 = vld [vmem:[%s5 + $0x50] sm:$0xff]
        %v1131 = vld [vmem:[%s5 + $0x58] sm:$0xff]
        %v1132 = vld [vmem:[%s5 + $0x60] sm:$0xff]
        %v1133 = vld [vmem:[%s5 + $0x68] sm:$0xff]
        %v1134 = vld [vmem:[%s5 + $0x70] sm:$0xff]
        %v1135 = vld [vmem:[%s5 + $0x78] sm:$0xff]
        %v1136 = vld [vmem:[%s5 + $0x80] sm:$0xff]
        %v1137 = vld [vmem:[%s5 + $0x88] sm:$0xff]
        %v1138 = vld [vmem:[%s5 + $0x90] sm:$0xff]
        %v1139 = vld [vmem:[%s5 + $0x98] sm:$0xff]
        %v1140 = vld [vmem:[%s5 + $0xa0] sm:$0xff]
        %v1141 = vld [vmem:[%s5 + $0xa8] sm:$0xff]
        %v1142 = vld [vmem:[%s5 + $0xb0] sm:$0xff]
        %v1143 = vld [vmem:[%s5 + $0xb8] sm:$0xff]
        %v1144 = vld [vmem:[%s5 + $0xc0] sm:$0xff]
        %v1145 = vld [vmem:[%s5 + $0xc8] sm:$0xff]
        %v1146 = vld [vmem:[%s5 + $0xd0] sm:$0xff]
        %v1147 = vld [vmem:[%s5 + $0xd8] sm:$0xff]
        %v1148 = vld [vmem:[%s5 + $0xe0] sm:$0xff]
        %v1149 = vld [vmem:[%s5 + $0xe8] sm:$0xff]
        %v1150 = vld [vmem:[%s5 + $0xf0] sm:$0xff]
        %v1151 = vld [vmem:[%s5 + $0xf8] sm:$0xff]
        %v1184 = vunpack.c.l.b16 %v1120
        %v1185 = vunpack.c.h.b16 %v1120
        %v1186 = vunpack.c.l.b16 %v1121
        %v1187 = vunpack.c.h.b16 %v1121
        %v1188 = vunpack.c.l.b16 %v1122
        %v1189 = vunpack.c.h.b16 %v1122
        %v1190 = vunpack.c.l.b16 %v1123
        %v1191 = vunpack.c.h.b16 %v1123
        %v1192 = vunpack.c.l.b16 %v1124
        %v1193 = vunpack.c.h.b16 %v1124
        %v1194 = vunpack.c.l.b16 %v1125
        %v1195 = vunpack.c.h.b16 %v1125
        %v1196 = vunpack.c.l.b16 %v1126
        %v1197 = vunpack.c.h.b16 %v1126
        %v1198 = vunpack.c.l.b16 %v1127
        %v1199 = vunpack.c.h.b16 %v1127
        %v1200 = vunpack.c.l.b16 %v1128
        %v1201 = vunpack.c.h.b16 %v1128
        %v1202 = vunpack.c.l.b16 %v1129
        %v1203 = vunpack.c.h.b16 %v1129
        %v1204 = vunpack.c.l.b16 %v1130
        %v1205 = vunpack.c.h.b16 %v1130
        %v1206 = vunpack.c.l.b16 %v1131
        %v1207 = vunpack.c.h.b16 %v1131
        %v1208 = vunpack.c.l.b16 %v1132
        %v1209 = vunpack.c.h.b16 %v1132
        %v1210 = vunpack.c.l.b16 %v1133
        %v1211 = vunpack.c.h.b16 %v1133
        %v1212 = vunpack.c.l.b16 %v1134
        %v1213 = vunpack.c.h.b16 %v1134
        %v1214 = vunpack.c.l.b16 %v1135
        %v1215 = vunpack.c.h.b16 %v1135
        %v1216 = vunpack.c.l.b16 %v1136
        %v1217 = vunpack.c.h.b16 %v1136
        %v1218 = vunpack.c.l.b16 %v1137
        %v1219 = vunpack.c.h.b16 %v1137
        %v1220 = vunpack.c.l.b16 %v1138
        %v1221 = vunpack.c.h.b16 %v1138
        %v1222 = vunpack.c.l.b16 %v1139
        %v1223 = vunpack.c.h.b16 %v1139
        %v1224 = vunpack.c.l.b16 %v1140
        %v1225 = vunpack.c.h.b16 %v1140
        %v1226 = vunpack.c.l.b16 %v1141
        %v1227 = vunpack.c.h.b16 %v1141
        %v1228 = vunpack.c.l.b16 %v1142
        %v1229 = vunpack.c.h.b16 %v1142
        %v1230 = vunpack.c.l.b16 %v1143
        %v1231 = vunpack.c.h.b16 %v1143
        %v1232 = vunpack.c.l.b16 %v1144
        %v1233 = vunpack.c.h.b16 %v1144
        %v1234 = vunpack.c.l.b16 %v1145
        %v1235 = vunpack.c.h.b16 %v1145
        %v1236 = vunpack.c.l.b16 %v1146
        %v1237 = vunpack.c.h.b16 %v1146
        %v1238 = vunpack.c.l.b16 %v1147
        %v1239 = vunpack.c.h.b16 %v1147
        %v1240 = vunpack.c.l.b16 %v1148
        %v1241 = vunpack.c.h.b16 %v1148
        %v1242 = vunpack.c.l.b16 %v1149
        %v1243 = vunpack.c.h.b16 %v1149
        %v1244 = vunpack.c.l.b16 %v1150
        %v1245 = vunpack.c.h.b16 %v1150
        %v1246 = vunpack.c.l.b16 %v1151
        %v1247 = vunpack.c.h.b16 %v1151
        %v1248 = vpack.c.b16 %v1188, %v1184
        %v1249 = vpack.c.b16 %v1189, %v1185
        %v1250 = vpack.c.b16 %v1190, %v1186
        %v1251 = vpack.c.b16 %v1191, %v1187
        %v1252 = vpack.c.b16 %v1196, %v1192
        %v1253 = vpack.c.b16 %v1197, %v1193
        %v1254 = vpack.c.b16 %v1198, %v1194
        %v1255 = vpack.c.b16 %v1199, %v1195
        %v1256 = vpack.c.b16 %v1204, %v1200
        %v1257 = vpack.c.b16 %v1205, %v1201
        %v1258 = vpack.c.b16 %v1206, %v1202
        %v1259 = vpack.c.b16 %v1207, %v1203
        %v1260 = vpack.c.b16 %v1212, %v1208
        %v1261 = vpack.c.b16 %v1213, %v1209
        %v1262 = vpack.c.b16 %v1214, %v1210
        %v1263 = vpack.c.b16 %v1215, %v1211
        %v1264 = vpack.c.b16 %v1220, %v1216
        %v1265 = vpack.c.b16 %v1221, %v1217
        %v1266 = vpack.c.b16 %v1222, %v1218
        %v1267 = vpack.c.b16 %v1223, %v1219
        %v1268 = vpack.c.b16 %v1228, %v1224
        %v1269 = vpack.c.b16 %v1229, %v1225
        %v1270 = vpack.c.b16 %v1230, %v1226
        %v1271 = vpack.c.b16 %v1231, %v1227
        %v1272 = vpack.c.b16 %v1236, %v1232
        %v1273 = vpack.c.b16 %v1237, %v1233
        %v1274 = vpack.c.b16 %v1238, %v1234
        %v1275 = vpack.c.b16 %v1239, %v1235
        %v1276 = vpack.c.b16 %v1244, %v1240
        %v1277 = vpack.c.b16 %v1245, %v1241
        %v1278 = vpack.c.b16 %v1246, %v1242
        %v1279 = vpack.c.b16 %v1247, %v1243
        %1312 = vmatprep.subr.bf16.mxu0 %v1277
        %1313 = vmatpush1.bf16.msra.mxu0 %v1276
        %1314 = vmatprep.subr.bf16.mxu0 %v1273
        %1315 = vmatpush1.bf16.msra.mxu0 %v1272
        %1316 = vmatprep.subr.bf16.mxu0 %v1269
        %1317 = vmatpush1.bf16.msra.mxu0 %v1268
        %1318 = vmatprep.subr.bf16.mxu0 %v1265
        %1319 = vmatpush1.bf16.msra.mxu0 %v1264
        %1320 = vmatprep.subr.bf16.mxu0 %v1261
        %1321 = vmatpush1.bf16.msra.mxu0 %v1260
        %1322 = vmatprep.subr.bf16.mxu0 %v1257
        %1323 = vmatpush1.bf16.msra.mxu0 %v1256
        %1324 = vmatprep.subr.bf16.mxu0 %v1253
        %1325 = vmatpush1.bf16.msra.mxu0 %v1252
        %1326 = vmatprep.subr.bf16.mxu0 %v1249
        %1327 = vmatpush1.bf16.msra.mxu0 %v1248
        %1328 = vmatprep.subr.bf16.mxu0 0
        %1329 = vmatpush2.bf16.msra.mxu0 0
        %1330 = vmatprep.subr.bf16.mxu0 0
        %1331 = vmatpush2.bf16.msra.mxu0 0
        %1332 = vmatprep.subr.bf16.mxu0 0
        %1333 = vmatpush2.bf16.msra.mxu0 0
        %1334 = vmatprep.subr.bf16.mxu0 0
        %1335 = vmatpush2.bf16.msra.mxu0 0
        %1336 = vmatprep.subr.bf16.mxu0 0
        %1337 = vmatpush2.bf16.msra.mxu0 0
        %1338 = vmatprep.subr.bf16.mxu0 0
        %1339 = vmatpush2.bf16.msra.mxu0 0
        %1340 = vmatprep.subr.bf16.mxu0 0
        %1341 = vmatpush2.bf16.msra.mxu0 0
        %1342 = vmatprep.subr.bf16.mxu0 0
        %1343 = vmatpush2.bf16.msra.mxu0 0
        %1344 = vmatprep.mubr.bf16.mxu0 0
        %1345 = vmatmul.mubr.bf16.gmra.mxu0 %v1112
        %v1346 = vpop.f32.mrf.mxu0
        %v1347 = vadd.f32 0.0, %v1346
        %v1348 = vpop.f32.mrf.mxu0
        %v1349 = vadd.f32 0.0, %v1348
        %v1350 = vpop.f32.mrf.mxu0
        %v1351 = vadd.f32 0.0, %v1350
        %v1352 = vpop.f32.mrf.mxu0
        %v1353 = vadd.f32 0.0, %v1352
        %1354 = vmatprep.mubr.bf16.mxu0 0
        %1355 = vmatmul.mubr.bf16.gmra.mxu0 %v1113
        %v1356 = vpop.f32.mrf.mxu0
        %v1357 = vadd.f32 0.0, %v1356
        %v1358 = vpop.f32.mrf.mxu0
        %v1359 = vadd.f32 0.0, %v1358
        %v1360 = vpop.f32.mrf.mxu0
        %v1361 = vadd.f32 0.0, %v1360
        %v1362 = vpop.f32.mrf.mxu0
        %v1363 = vadd.f32 0.0, %v1362
        %1364 = vmatprep.mubr.bf16.mxu0 0
        %1365 = vmatmul.mubr.bf16.gmra.mxu0 %v1114
        %v1366 = vpop.f32.mrf.mxu0
        %v1367 = vadd.f32 0.0, %v1366
        %v1368 = vpop.f32.mrf.mxu0
        %v1369 = vadd.f32 0.0, %v1368
        %v1370 = vpop.f32.mrf.mxu0
        %v1371 = vadd.f32 0.0, %v1370
        %v1372 = vpop.f32.mrf.mxu0
        %v1373 = vadd.f32 0.0, %v1372
        %1374 = vmatprep.mubr.bf16.mxu0 0
        %1375 = vmatmul.mubr.bf16.gmra.mxu0 %v1115
        %v1376 = vpop.f32.mrf.mxu0
        %v1377 = vadd.f32 0.0, %v1376
        %v1378 = vpop.f32.mrf.mxu0
        %v1379 = vadd.f32 0.0, %v1378
        %v1380 = vpop.f32.mrf.mxu0
        %v1381 = vadd.f32 0.0, %v1380
        %v1382 = vpop.f32.mrf.mxu0
        %v1383 = vadd.f32 0.0, %v1382
        %1384 = vmatprep.mubr.bf16.mxu0 0
        %1385 = vmatmul.mubr.bf16.gmra.mxu0 %v1116
        %v1386 = vpop.f32.mrf.mxu0
        %v1387 = vadd.f32 0.0, %v1386
        %v1388 = vpop.f32.mrf.mxu0
        %v1389 = vadd.f32 0.0, %v1388
        %v1390 = vpop.f32.mrf.mxu0
        %v1391 = vadd.f32 0.0, %v1390
        %v1392 = vpop.f32.mrf.mxu0
        %v1393 = vadd.f32 0.0, %v1392
        %1394 = vmatprep.mubr.bf16.mxu0 0
        %1395 = vmatmul.mubr.bf16.gmra.mxu0 %v1117
        %v1396 = vpop.f32.mrf.mxu0
        %v1397 = vadd.f32 0.0, %v1396
        %v1398 = vpop.f32.mrf.mxu0
        %v1399 = vadd.f32 0.0, %v1398
        %v1400 = vpop.f32.mrf.mxu0
        %v1401 = vadd.f32 0.0, %v1400
        %v1402 = vpop.f32.mrf.mxu0
        %v1403 = vadd.f32 0.0, %v1402
        %1404 = vmatprep.mubr.bf16.mxu0 0
        %1405 = vmatmul.mubr.bf16.gmra.mxu0 %v1118
        %v1406 = vpop.f32.mrf.mxu0
        %v1407 = vadd.f32 0.0, %v1406
        %v1408 = vpop.f32.mrf.mxu0
        %v1409 = vadd.f32 0.0, %v1408
        %v1410 = vpop.f32.mrf.mxu0
        %v1411 = vadd.f32 0.0, %v1410
        %v1412 = vpop.f32.mrf.mxu0
        %v1413 = vadd.f32 0.0, %v1412
        %1414 = vmatprep.mubr.bf16.mxu0 0
        %1415 = vmatmul.mubr.bf16.gmra.mxu0 %v1119
        %v1416 = vpop.f32.mrf.mxu0
        %v1417 = vadd.f32 0.0, %v1416
        %v1418 = vpop.f32.mrf.mxu0
        %v1419 = vadd.f32 0.0, %v1418
        %v1420 = vpop.f32.mrf.mxu0
        %v1421 = vadd.f32 0.0, %v1420
        %v1422 = vpop.f32.mrf.mxu0
        %v1423 = vadd.f32 0.0, %v1422
        %1424 = vdwg.mxu0
        %1425 = vmatprep.subr.bf16.mxu0 %v1279
        %1426 = vmatpush1.bf16.msra.mxu0 %v1278
        %1427 = vmatprep.subr.bf16.mxu0 %v1275
        %1428 = vmatpush1.bf16.msra.mxu0 %v1274
        %1429 = vmatprep.subr.bf16.mxu0 %v1271
        %1430 = vmatpush1.bf16.msra.mxu0 %v1270
        %1431 = vmatprep.subr.bf16.mxu0 %v1267
        %1432 = vmatpush1.bf16.msra.mxu0 %v1266
        %1433 = vmatprep.subr.bf16.mxu0 %v1263
        %1434 = vmatpush1.bf16.msra.mxu0 %v1262
        %1435 = vmatprep.subr.bf16.mxu0 %v1259
        %1436 = vmatpush1.bf16.msra.mxu0 %v1258
        %1437 = vmatprep.subr.bf16.mxu0 %v1255
        %1438 = vmatpush1.bf16.msra.mxu0 %v1254
        %1439 = vmatprep.subr.bf16.mxu0 %v1251
        %1440 = vmatpush1.bf16.msra.mxu0 %v1250
        %1441 = vmatprep.subr.bf16.mxu0 0
        %1442 = vmatpush2.bf16.msra.mxu0 0
        %1443 = vmatprep.subr.bf16.mxu0 0
        %1444 = vmatpush2.bf16.msra.mxu0 0
        %1445 = vmatprep.subr.bf16.mxu0 0
        %1446 = vmatpush2.bf16.msra.mxu0 0
        %1447 = vmatprep.subr.bf16.mxu0 0
        %1448 = vmatpush2.bf16.msra.mxu0 0
        %1449 = vmatprep.subr.bf16.mxu0 0
        %1450 = vmatpush2.bf16.msra.mxu0 0
        %1451 = vmatprep.subr.bf16.mxu0 0
        %1452 = vmatpush2.bf16.msra.mxu0 0
        %1453 = vmatprep.subr.bf16.mxu0 0
        %1454 = vmatpush2.bf16.msra.mxu0 0
        %1455 = vmatprep.subr.bf16.mxu0 0
        %1456 = vmatpush2.bf16.msra.mxu0 0
        %1457 = vmatprep.mubr.bf16.mxu0 0
        %1458 = vmatmul.mubr.bf16.gmra.mxu0 %v1112
        %v1459 = vpop.f32.mrf.mxu0
        %v1460 = vadd.f32 0.0, %v1459
        %v1461 = vpop.f32.mrf.mxu0
        %v1462 = vadd.f32 0.0, %v1461
        %v1463 = vpop.f32.mrf.mxu0
        %v1464 = vadd.f32 0.0, %v1463
        %v1465 = vpop.f32.mrf.mxu0
        %v1466 = vadd.f32 0.0, %v1465
        %1467 = vmatprep.mubr.bf16.mxu0 0
        %1468 = vmatmul.mubr.bf16.gmra.mxu0 %v1113
        %v1469 = vpop.f32.mrf.mxu0
        %v1470 = vadd.f32 0.0, %v1469
        %v1471 = vpop.f32.mrf.mxu0
        %v1472 = vadd.f32 0.0, %v1471
        %v1473 = vpop.f32.mrf.mxu0
        %v1474 = vadd.f32 0.0, %v1473
        %v1475 = vpop.f32.mrf.mxu0
        %v1476 = vadd.f32 0.0, %v1475
        %1477 = vmatprep.mubr.bf16.mxu0 0
        %1478 = vmatmul.mubr.bf16.gmra.mxu0 %v1114
        %v1479 = vpop.f32.mrf.mxu0
        %v1480 = vadd.f32 0.0, %v1479
        %v1481 = vpop.f32.mrf.mxu0
        %v1482 = vadd.f32 0.0, %v1481
        %v1483 = vpop.f32.mrf.mxu0
        %v1484 = vadd.f32 0.0, %v1483
        %v1485 = vpop.f32.mrf.mxu0
        %v1486 = vadd.f32 0.0, %v1485
        %1487 = vmatprep.mubr.bf16.mxu0 0
        %1488 = vmatmul.mubr.bf16.gmra.mxu0 %v1115
        %v1489 = vpop.f32.mrf.mxu0
        %v1490 = vadd.f32 0.0, %v1489
        %v1491 = vpop.f32.mrf.mxu0
        %v1492 = vadd.f32 0.0, %v1491
        %v1493 = vpop.f32.mrf.mxu0
        %v1494 = vadd.f32 0.0, %v1493
        %v1495 = vpop.f32.mrf.mxu0
        %v1496 = vadd.f32 0.0, %v1495
        %1497 = vmatprep.mubr.bf16.mxu0 0
        %1498 = vmatmul.mubr.bf16.gmra.mxu0 %v1116
        %v1499 = vpop.f32.mrf.mxu0
        %v1500 = vadd.f32 0.0, %v1499
        %v1501 = vpop.f32.mrf.mxu0
        %v1502 = vadd.f32 0.0, %v1501
        %v1503 = vpop.f32.mrf.mxu0
        %v1504 = vadd.f32 0.0, %v1503
        %v1505 = vpop.f32.mrf.mxu0
        %v1506 = vadd.f32 0.0, %v1505
        %1507 = vmatprep.mubr.bf16.mxu0 0
        %1508 = vmatmul.mubr.bf16.gmra.mxu0 %v1117
        %v1509 = vpop.f32.mrf.mxu0
        %v1510 = vadd.f32 0.0, %v1509
        %v1511 = vpop.f32.mrf.mxu0
        %v1512 = vadd.f32 0.0, %v1511
        %v1513 = vpop.f32.mrf.mxu0
        %v1514 = vadd.f32 0.0, %v1513
        %v1515 = vpop.f32.mrf.mxu0
        %v1516 = vadd.f32 0.0, %v1515
        %1517 = vmatprep.mubr.bf16.mxu0 0
        %1518 = vmatmul.mubr.bf16.gmra.mxu0 %v1118
        %v1519 = vpop.f32.mrf.mxu0
        %v1520 = vadd.f32 0.0, %v1519
        %v1521 = vpop.f32.mrf.mxu0
        %v1522 = vadd.f32 0.0, %v1521
        %v1523 = vpop.f32.mrf.mxu0
        %v1524 = vadd.f32 0.0, %v1523
        %v1525 = vpop.f32.mrf.mxu0
        %v1526 = vadd.f32 0.0, %v1525
        %1527 = vmatprep.mubr.bf16.mxu0 0
        %1528 = vmatmul.mubr.bf16.gmra.mxu0 %v1119
        %v1529 = vpop.f32.mrf.mxu0
        %v1530 = vadd.f32 0.0, %v1529
        %v1531 = vpop.f32.mrf.mxu0
        %v1532 = vadd.f32 0.0, %v1531
        %v1533 = vpop.f32.mrf.mxu0
        %v1534 = vadd.f32 0.0, %v1533
        %v1535 = vpop.f32.mrf.mxu0
        %v1536 = vadd.f32 0.0, %v1535
        %1537 = vdwg.mxu0
        %v1538 = vxor.u32 %v1347, 2147483648
        %v1539 = vxor.u32 %v1349, 2147483648
        %v1540 = vxor.u32 %v1351, 2147483648
        %v1541 = vxor.u32 %v1353, 2147483648
        %v1542 = vxor.u32 %v1357, 2147483648
        %v1543 = vxor.u32 %v1359, 2147483648
        %v1544 = vxor.u32 %v1361, 2147483648
        %v1545 = vxor.u32 %v1363, 2147483648
        %v1546 = vxor.u32 %v1367, 2147483648
        %v1547 = vxor.u32 %v1369, 2147483648
        %v1548 = vxor.u32 %v1371, 2147483648
        %v1549 = vxor.u32 %v1373, 2147483648
        %v1550 = vxor.u32 %v1377, 2147483648
        %v1551 = vxor.u32 %v1379, 2147483648
        %v1552 = vxor.u32 %v1381, 2147483648
        %v1553 = vxor.u32 %v1383, 2147483648
        %v1554 = vxor.u32 %v1387, 2147483648
        %v1555 = vxor.u32 %v1389, 2147483648
        %v1556 = vxor.u32 %v1391, 2147483648
        %v1557 = vxor.u32 %v1393, 2147483648
        %v1558 = vxor.u32 %v1397, 2147483648
        %v1559 = vxor.u32 %v1399, 2147483648
        %v1560 = vxor.u32 %v1401, 2147483648
        %v1561 = vxor.u32 %v1403, 2147483648
        %v1562 = vxor.u32 %v1407, 2147483648
        %v1563 = vxor.u32 %v1409, 2147483648
        %v1564 = vxor.u32 %v1411, 2147483648
        %v1565 = vxor.u32 %v1413, 2147483648
        %v1566 = vxor.u32 %v1417, 2147483648
        %v1567 = vxor.u32 %v1419, 2147483648
        %v1568 = vxor.u32 %v1421, 2147483648
        %v1569 = vxor.u32 %v1423, 2147483648
        %v1570 = vmul.f32 %v1538, 1.442695
        %v1571 = vpow.pop %v1570
        %v1572 = vmul.f32 %v1539, 1.442695
        %v1573 = vpow.pop %v1572
        %v1574 = vmul.f32 %v1540, 1.442695
        %v1575 = vpow.pop %v1574
        %v1576 = vmul.f32 %v1541, 1.442695
        %v1577 = vpow.pop %v1576
        %v1578 = vmul.f32 %v1542, 1.442695
        %v1579 = vpow.pop %v1578
        %v1580 = vmul.f32 %v1543, 1.442695
        %v1581 = vpow.pop %v1580
        %v1582 = vmul.f32 %v1544, 1.442695
        %v1583 = vpow.pop %v1582
        %v1584 = vmul.f32 %v1545, 1.442695
        %v1585 = vpow.pop %v1584
        %v1586 = vmul.f32 %v1546, 1.442695
        %v1587 = vpow.pop %v1586
        %v1588 = vmul.f32 %v1547, 1.442695
        %v1589 = vpow.pop %v1588
        %v1590 = vmul.f32 %v1548, 1.442695
        %v1591 = vpow.pop %v1590
        %v1592 = vmul.f32 %v1549, 1.442695
        %v1593 = vpow.pop %v1592
        %v1594 = vmul.f32 %v1550, 1.442695
        %v1595 = vpow.pop %v1594
        %v1596 = vmul.f32 %v1551, 1.442695
        %v1597 = vpow.pop %v1596
        %v1598 = vmul.f32 %v1552, 1.442695
        %v1599 = vpow.pop %v1598
        %v1600 = vmul.f32 %v1553, 1.442695
        %v1601 = vpow.pop %v1600
        %v1602 = vmul.f32 %v1554, 1.442695
        %v1603 = vpow.pop %v1602
        %v1604 = vmul.f32 %v1555, 1.442695
        %v1605 = vpow.pop %v1604
        %v1606 = vmul.f32 %v1556, 1.442695
        %v1607 = vpow.pop %v1606
        %v1608 = vmul.f32 %v1557, 1.442695
        %v1609 = vpow.pop %v1608
        %v1610 = vmul.f32 %v1558, 1.442695
        %v1611 = vpow.pop %v1610
        %v1612 = vmul.f32 %v1559, 1.442695
        %v1613 = vpow.pop %v1612
        %v1614 = vmul.f32 %v1560, 1.442695
        %v1615 = vpow.pop %v1614
        %v1616 = vmul.f32 %v1561, 1.442695
        %v1617 = vpow.pop %v1616
        %v1618 = vmul.f32 %v1562, 1.442695
        %v1619 = vpow.pop %v1618
        %v1620 = vmul.f32 %v1563, 1.442695
        %v1621 = vpow.pop %v1620
        %v1622 = vmul.f32 %v1564, 1.442695
        %v1623 = vpow.pop %v1622
        %v1624 = vmul.f32 %v1565, 1.442695
        %v1625 = vpow.pop %v1624
        %v1626 = vmul.f32 %v1566, 1.442695
        %v1627 = vpow.pop %v1626
        %v1628 = vmul.f32 %v1567, 1.442695
        %v1629 = vpow.pop %v1628
        %v1630 = vmul.f32 %v1568, 1.442695
        %v1631 = vpow.pop %v1630
        %v1632 = vmul.f32 %v1569, 1.442695
        %v1633 = vpow.pop %v1632
        %v1634 = vadd.f32 %v1571, 1.0
        %v1635 = vadd.f32 %v1573, 1.0
        %v1636 = vadd.f32 %v1575, 1.0
        %v1637 = vadd.f32 %v1577, 1.0
        %v1638 = vadd.f32 %v1579, 1.0
        %v1639 = vadd.f32 %v1581, 1.0
        %v1640 = vadd.f32 %v1583, 1.0
        %v1641 = vadd.f32 %v1585, 1.0
        %v1642 = vadd.f32 %v1587, 1.0
        %v1643 = vadd.f32 %v1589, 1.0
        %v1644 = vadd.f32 %v1591, 1.0
        %v1645 = vadd.f32 %v1593, 1.0
        %v1646 = vadd.f32 %v1595, 1.0
        %v1647 = vadd.f32 %v1597, 1.0
        %v1648 = vadd.f32 %v1599, 1.0
        %v1649 = vadd.f32 %v1601, 1.0
        %v1650 = vadd.f32 %v1603, 1.0
        %v1651 = vadd.f32 %v1605, 1.0
        %v1652 = vadd.f32 %v1607, 1.0
        %v1653 = vadd.f32 %v1609, 1.0
        %v1654 = vadd.f32 %v1611, 1.0
        %v1655 = vadd.f32 %v1613, 1.0
        %v1656 = vadd.f32 %v1615, 1.0
        %v1657 = vadd.f32 %v1617, 1.0
        %v1658 = vadd.f32 %v1619, 1.0
        %v1659 = vadd.f32 %v1621, 1.0
        %v1660 = vadd.f32 %v1623, 1.0
        %v1661 = vadd.f32 %v1625, 1.0
        %v1662 = vadd.f32 %v1627, 1.0
        %v1663 = vadd.f32 %v1629, 1.0
        %v1664 = vadd.f32 %v1631, 1.0
        %v1665 = vadd.f32 %v1633, 1.0
        %v1666 = vrcp.pop %v1634
        %v1667 = vmul.f32 1.0, %v1666
        %v1668 = vrcp.pop %v1635
        %v1669 = vmul.f32 1.0, %v1668
        %v1670 = vrcp.pop %v1636
        %v1671 = vmul.f32 1.0, %v1670
        %v1672 = vrcp.pop %v1637
        %v1673 = vmul.f32 1.0, %v1672
        %v1674 = vrcp.pop %v1638
        %v1675 = vmul.f32 1.0, %v1674
        %v1676 = vrcp.pop %v1639
        %v1677 = vmul.f32 1.0, %v1676
        %v1678 = vrcp.pop %v1640
        %v1679 = vmul.f32 1.0, %v1678
        %v1680 = vrcp.pop %v1641
        %v1681 = vmul.f32 1.0, %v1680
        %v1682 = vrcp.pop %v1642
        %v1683 = vmul.f32 1.0, %v1682
        %v1684 = vrcp.pop %v1643
        %v1685 = vmul.f32 1.0, %v1684
        %v1686 = vrcp.pop %v1644
        %v1687 = vmul.f32 1.0, %v1686
        %v1688 = vrcp.pop %v1645
        %v1689 = vmul.f32 1.0, %v1688
        %v1690 = vrcp.pop %v1646
        %v1691 = vmul.f32 1.0, %v1690
        %v1692 = vrcp.pop %v1647
        %v1693 = vmul.f32 1.0, %v1692
        %v1694 = vrcp.pop %v1648
        %v1695 = vmul.f32 1.0, %v1694
        %v1696 = vrcp.pop %v1649
        %v1697 = vmul.f32 1.0, %v1696
        %v1698 = vrcp.pop %v1650
        %v1699 = vmul.f32 1.0, %v1698
        %v1700 = vrcp.pop %v1651
        %v1701 = vmul.f32 1.0, %v1700
        %v1702 = vrcp.pop %v1652
        %v1703 = vmul.f32 1.0, %v1702
        %v1704 = vrcp.pop %v1653
        %v1705 = vmul.f32 1.0, %v1704
        %v1706 = vrcp.pop %v1654
        %v1707 = vmul.f32 1.0, %v1706
        %v1708 = vrcp.pop %v1655
        %v1709 = vmul.f32 1.0, %v1708
        %v1710 = vrcp.pop %v1656
        %v1711 = vmul.f32 1.0, %v1710
        %v1712 = vrcp.pop %v1657
        %v1713 = vmul.f32 1.0, %v1712
        %v1714 = vrcp.pop %v1658
        %v1715 = vmul.f32 1.0, %v1714
        %v1716 = vrcp.pop %v1659
        %v1717 = vmul.f32 1.0, %v1716
        %v1718 = vrcp.pop %v1660
        %v1719 = vmul.f32 1.0, %v1718
        %v1720 = vrcp.pop %v1661
        %v1721 = vmul.f32 1.0, %v1720
        %v1722 = vrcp.pop %v1662
        %v1723 = vmul.f32 1.0, %v1722
        %v1724 = vrcp.pop %v1663
        %v1725 = vmul.f32 1.0, %v1724
        %v1726 = vrcp.pop %v1664
        %v1727 = vmul.f32 1.0, %v1726
        %v1728 = vrcp.pop %v1665
        %v1729 = vmul.f32 1.0, %v1728
        %v1730 = vmul.f32 %v1347, %v1667
        %v1731 = vmul.f32 %v1349, %v1669
        %v1732 = vmul.f32 %v1351, %v1671
        %v1733 = vmul.f32 %v1353, %v1673
        %v1734 = vmul.f32 %v1357, %v1675
        %v1735 = vmul.f32 %v1359, %v1677
        %v1736 = vmul.f32 %v1361, %v1679
        %v1737 = vmul.f32 %v1363, %v1681
        %v1738 = vmul.f32 %v1367, %v1683
        %v1739 = vmul.f32 %v1369, %v1685
        %v1740 = vmul.f32 %v1371, %v1687
        %v1741 = vmul.f32 %v1373, %v1689
        %v1742 = vmul.f32 %v1377, %v1691
        %v1743 = vmul.f32 %v1379, %v1693
        %v1744 = vmul.f32 %v1381, %v1695
        %v1745 = vmul.f32 %v1383, %v1697
        %v1746 = vmul.f32 %v1387, %v1699
        %v1747 = vmul.f32 %v1389, %v1701
        %v1748 = vmul.f32 %v1391, %v1703
        %v1749 = vmul.f32 %v1393, %v1705
        %v1750 = vmul.f32 %v1397, %v1707
        %v1751 = vmul.f32 %v1399, %v1709
        %v1752 = vmul.f32 %v1401, %v1711
        %v1753 = vmul.f32 %v1403, %v1713
        %v1754 = vmul.f32 %v1407, %v1715
        %v1755 = vmul.f32 %v1409, %v1717
        %v1756 = vmul.f32 %v1411, %v1719
        %v1757 = vmul.f32 %v1413, %v1721
        %v1758 = vmul.f32 %v1417, %v1723
        %v1759 = vmul.f32 %v1419, %v1725
        %v1760 = vmul.f32 %v1421, %v1727
        %v1761 = vmul.f32 %v1423, %v1729
        %v1762 = vmul.f32 %v1730, %v1460
        %v1763 = vmul.f32 %v1731, %v1462
        %v1764 = vmul.f32 %v1732, %v1464
        %v1765 = vmul.f32 %v1733, %v1466
        %v1766 = vmul.f32 %v1734, %v1470
        %v1767 = vmul.f32 %v1735, %v1472
        %v1768 = vmul.f32 %v1736, %v1474
        %v1769 = vmul.f32 %v1737, %v1476
        %v1770 = vmul.f32 %v1738, %v1480
        %v1771 = vmul.f32 %v1739, %v1482
        %v1772 = vmul.f32 %v1740, %v1484
        %v1773 = vmul.f32 %v1741, %v1486
        %v1774 = vmul.f32 %v1742, %v1490
        %v1775 = vmul.f32 %v1743, %v1492
        %v1776 = vmul.f32 %v1744, %v1494
        %v1777 = vmul.f32 %v1745, %v1496
        %v1778 = vmul.f32 %v1746, %v1500
        %v1779 = vmul.f32 %v1747, %v1502
        %v1780 = vmul.f32 %v1748, %v1504
        %v1781 = vmul.f32 %v1749, %v1506
        %v1782 = vmul.f32 %v1750, %v1510
        %v1783 = vmul.f32 %v1751, %v1512
        %v1784 = vmul.f32 %v1752, %v1514
        %v1785 = vmul.f32 %v1753, %v1516
        %v1786 = vmul.f32 %v1754, %v1520
        %v1787 = vmul.f32 %v1755, %v1522
        %v1788 = vmul.f32 %v1756, %v1524
        %v1789 = vmul.f32 %v1757, %v1526
        %v1790 = vmul.f32 %v1758, %v1530
        %v1791 = vmul.f32 %v1759, %v1532
        %v1792 = vmul.f32 %v1760, %v1534
        %v1793 = vmul.f32 %v1761, %v1536
        %v1794 = vpack.c.bf16 %v1764, %v1762
        %v1795 = vpack.c.bf16 %v1765, %v1763
        %v1796 = vpack.c.bf16 %v1768, %v1766
        %v1797 = vpack.c.bf16 %v1769, %v1767
        %v1798 = vpack.c.bf16 %v1772, %v1770
        %v1799 = vpack.c.bf16 %v1773, %v1771
        %v1800 = vpack.c.bf16 %v1776, %v1774
        %v1801 = vpack.c.bf16 %v1777, %v1775
        %v1802 = vpack.c.bf16 %v1780, %v1778
        %v1803 = vpack.c.bf16 %v1781, %v1779
        %v1804 = vpack.c.bf16 %v1784, %v1782
        %v1805 = vpack.c.bf16 %v1785, %v1783
        %v1806 = vpack.c.bf16 %v1788, %v1786
        %v1807 = vpack.c.bf16 %v1789, %v1787
        %v1808 = vpack.c.bf16 %v1792, %v1790
        %v1809 = vpack.c.bf16 %v1793, %v1791
        %v1810 = vld [vmem:[#allocation7] sm:$0xf]
        %v1811 = vld [vmem:[#allocation7 + $0x4] sm:$0xf]
        %v1812 = vld [vmem:[#allocation7 + $0x8] sm:$0xf]
        %v1813 = vld [vmem:[#allocation7 + $0xc] sm:$0xf]
        %v1814 = vld [vmem:[#allocation7 + $0x10] sm:$0xf]
        %v1815 = vld [vmem:[#allocation7 + $0x14] sm:$0xf]
        %v1816 = vld [vmem:[#allocation7 + $0x18] sm:$0xf]
        %v1817 = vld [vmem:[#allocation7 + $0x1c] sm:$0xf]
        %v1818 = vld [vmem:[#allocation7 + $0x20] sm:$0xf]
        %v1819 = vld [vmem:[#allocation7 + $0x24] sm:$0xf]
        %v1820 = vld [vmem:[#allocation7 + $0x28] sm:$0xf]
        %v1821 = vld [vmem:[#allocation7 + $0x2c] sm:$0xf]
        %v1822 = vld [vmem:[#allocation7 + $0x30] sm:$0xf]
        %v1823 = vld [vmem:[#allocation7 + $0x34] sm:$0xf]
        %v1824 = vld [vmem:[#allocation7 + $0x38] sm:$0xf]
        %v1825 = vld [vmem:[#allocation7 + $0x3c] sm:$0xf]
        %v1826 = vld [vmem:[#allocation7 + $0x40] sm:$0xf]
        %v1827 = vld [vmem:[#allocation7 + $0x44] sm:$0xf]
        %v1828 = vld [vmem:[#allocation7 + $0x48] sm:$0xf]
        %v1829 = vld [vmem:[#allocation7 + $0x4c] sm:$0xf]
        %v1830 = vld [vmem:[#allocation7 + $0x50] sm:$0xf]
        %v1831 = vld [vmem:[#allocation7 + $0x54] sm:$0xf]
        %v1832 = vld [vmem:[#allocation7 + $0x58] sm:$0xf]
        %v1833 = vld [vmem:[#allocation7 + $0x5c] sm:$0xf]
        %v1834 = vld [vmem:[#allocation7 + $0x60] sm:$0xf]
        %v1835 = vld [vmem:[#allocation7 + $0x64] sm:$0xf]
        %v1836 = vld [vmem:[#allocation7 + $0x68] sm:$0xf]
        %v1837 = vld [vmem:[#allocation7 + $0x6c] sm:$0xf]
        %v1838 = vld [vmem:[#allocation7 + $0x70] sm:$0xf]
        %v1839 = vld [vmem:[#allocation7 + $0x74] sm:$0xf]
        %v1840 = vld [vmem:[#allocation7 + $0x78] sm:$0xf]
        %v1841 = vld [vmem:[#allocation7 + $0x7c] sm:$0xf]
        %v1874 = vunpack.c.l.b16 %v1810
        %v1875 = vunpack.c.l.b16 %v1811
        %v1876 = vunpack.c.l.b16 %v1812
        %v1877 = vunpack.c.l.b16 %v1813
        %v1878 = vunpack.c.l.b16 %v1814
        %v1879 = vunpack.c.l.b16 %v1815
        %v1880 = vunpack.c.l.b16 %v1816
        %v1881 = vunpack.c.l.b16 %v1817
        %v1882 = vunpack.c.l.b16 %v1818
        %v1883 = vunpack.c.l.b16 %v1819
        %v1884 = vunpack.c.l.b16 %v1820
        %v1885 = vunpack.c.l.b16 %v1821
        %v1886 = vunpack.c.l.b16 %v1822
        %v1887 = vunpack.c.l.b16 %v1823
        %v1888 = vunpack.c.l.b16 %v1824
        %v1889 = vunpack.c.l.b16 %v1825
        %v1890 = vunpack.c.l.b16 %v1826
        %v1891 = vunpack.c.l.b16 %v1827
        %v1892 = vunpack.c.l.b16 %v1828
        %v1893 = vunpack.c.l.b16 %v1829
        %v1894 = vunpack.c.l.b16 %v1830
        %v1895 = vunpack.c.l.b16 %v1831
        %v1896 = vunpack.c.l.b16 %v1832
        %v1897 = vunpack.c.l.b16 %v1833
        %v1898 = vunpack.c.l.b16 %v1834
        %v1899 = vunpack.c.l.b16 %v1835
        %v1900 = vunpack.c.l.b16 %v1836
        %v1901 = vunpack.c.l.b16 %v1837
        %v1902 = vunpack.c.l.b16 %v1838
        %v1903 = vunpack.c.l.b16 %v1839
        %v1904 = vunpack.c.l.b16 %v1840
        %v1905 = vunpack.c.l.b16 %v1841
        %v1906 = vpack.c.b16 %v1875, %v1874
        %v1907 = vpack.c.b16 %v1877, %v1876
        %v1908 = vpack.c.b16 %v1879, %v1878
        %v1909 = vpack.c.b16 %v1881, %v1880
        %v1910 = vpack.c.b16 %v1883, %v1882
        %v1911 = vpack.c.b16 %v1885, %v1884
        %v1912 = vpack.c.b16 %v1887, %v1886
        %v1913 = vpack.c.b16 %v1889, %v1888
        %v1914 = vpack.c.b16 %v1891, %v1890
        %v1915 = vpack.c.b16 %v1893, %v1892
        %v1916 = vpack.c.b16 %v1895, %v1894
        %v1917 = vpack.c.b16 %v1897, %v1896
        %v1918 = vpack.c.b16 %v1899, %v1898
        %v1919 = vpack.c.b16 %v1901, %v1900
        %v1920 = vpack.c.b16 %v1903, %v1902
        %v1921 = vpack.c.b16 %v1905, %v1904
        %1938 = vmatprep.subr.bf16.mxu0 0
        %1939 = vmatpush1.bf16.msra.mxu0 %v1913
        %1940 = vmatprep.subr.bf16.mxu0 0
        %1941 = vmatpush1.bf16.msra.mxu0 %v1912
        %1942 = vmatprep.subr.bf16.mxu0 0
        %1943 = vmatpush1.bf16.msra.mxu0 %v1911
        %1944 = vmatprep.subr.bf16.mxu0 0
        %1945 = vmatpush1.bf16.msra.mxu0 %v1910
        %1946 = vmatprep.subr.bf16.mxu0 0
        %1947 = vmatpush1.bf16.msra.mxu0 %v1909
        %1948 = vmatprep.subr.bf16.mxu0 0
        %1949 = vmatpush1.bf16.msra.mxu0 %v1908
        %1950 = vmatprep.subr.bf16.mxu0 0
        %1951 = vmatpush1.bf16.msra.mxu0 %v1907
        %1952 = vmatprep.subr.bf16.mxu0 0
        %1953 = vmatpush1.bf16.msra.mxu0 %v1906
        %1954 = vmatprep.subr.bf16.mxu0 0
        %1955 = vmatpush2.bf16.msra.mxu0 %v1921
        %1956 = vmatprep.subr.bf16.mxu0 0
        %1957 = vmatpush2.bf16.msra.mxu0 %v1920
        %1958 = vmatprep.subr.bf16.mxu0 0
        %1959 = vmatpush2.bf16.msra.mxu0 %v1919
        %1960 = vmatprep.subr.bf16.mxu0 0
        %1961 = vmatpush2.bf16.msra.mxu0 %v1918
        %1962 = vmatprep.subr.bf16.mxu0 0
        %1963 = vmatpush2.bf16.msra.mxu0 %v1917
        %1964 = vmatprep.subr.bf16.mxu0 0
        %1965 = vmatpush2.bf16.msra.mxu0 %v1916
        %1966 = vmatprep.subr.bf16.mxu0 0
        %1967 = vmatpush2.bf16.msra.mxu0 %v1915
        %1968 = vmatprep.subr.bf16.mxu0 0
        %1969 = vmatpush2.bf16.msra.mxu0 %v1914
        %1970 = vmatprep.mubr.bf16.mxu0 %v1795
        %1971 = vmatmul.mubr.bf16.gmra.mxu0 %v1794
        %v1972 = vpop.f32.mrf.mxu0
        %v1973 = vadd.f32 0.0, %v1972
        %v1974 = vpop.f32.mrf.mxu0
        %v1975 = vpop.f32.mrf.mxu0
        %v1976 = vadd.f32 0.0, %v1975
        %v1977 = vpop.f32.mrf.mxu0
        %1978 = vmatprep.mubr.bf16.mxu0 %v1797
        %1979 = vmatmul.mubr.bf16.gmra.mxu0 %v1796
        %v1980 = vpop.f32.mrf.mxu0
        %v1981 = vadd.f32 0.0, %v1980
        %v1982 = vpop.f32.mrf.mxu0
        %v1983 = vpop.f32.mrf.mxu0
        %v1984 = vadd.f32 0.0, %v1983
        %v1985 = vpop.f32.mrf.mxu0
        %1986 = vmatprep.mubr.bf16.mxu0 %v1799
        %1987 = vmatmul.mubr.bf16.gmra.mxu0 %v1798
        %v1988 = vpop.f32.mrf.mxu0
        %v1989 = vadd.f32 0.0, %v1988
        %v1990 = vpop.f32.mrf.mxu0
        %v1991 = vpop.f32.mrf.mxu0
        %v1992 = vadd.f32 0.0, %v1991
        %v1993 = vpop.f32.mrf.mxu0
        %1994 = vmatprep.mubr.bf16.mxu0 %v1801
        %1995 = vmatmul.mubr.bf16.gmra.mxu0 %v1800
        %v1996 = vpop.f32.mrf.mxu0
        %v1997 = vadd.f32 0.0, %v1996
        %v1998 = vpop.f32.mrf.mxu0
        %v1999 = vpop.f32.mrf.mxu0
        %v2000 = vadd.f32 0.0, %v1999
        %v2001 = vpop.f32.mrf.mxu0
        %2002 = vmatprep.mubr.bf16.mxu0 %v1803
        %2003 = vmatmul.mubr.bf16.gmra.mxu0 %v1802
        %v2004 = vpop.f32.mrf.mxu0
        %v2005 = vadd.f32 0.0, %v2004
        %v2006 = vpop.f32.mrf.mxu0
        %v2007 = vpop.f32.mrf.mxu0
        %v2008 = vadd.f32 0.0, %v2007
        %v2009 = vpop.f32.mrf.mxu0
        %2010 = vmatprep.mubr.bf16.mxu0 %v1805
        %2011 = vmatmul.mubr.bf16.gmra.mxu0 %v1804
        %v2012 = vpop.f32.mrf.mxu0
        %v2013 = vadd.f32 0.0, %v2012
        %v2014 = vpop.f32.mrf.mxu0
        %v2015 = vpop.f32.mrf.mxu0
        %v2016 = vadd.f32 0.0, %v2015
        %v2017 = vpop.f32.mrf.mxu0
        %2018 = vmatprep.mubr.bf16.mxu0 %v1807
        %2019 = vmatmul.mubr.bf16.gmra.mxu0 %v1806
        %v2020 = vpop.f32.mrf.mxu0
        %v2021 = vadd.f32 0.0, %v2020
        %v2022 = vpop.f32.mrf.mxu0
        %v2023 = vpop.f32.mrf.mxu0
        %v2024 = vadd.f32 0.0, %v2023
        %v2025 = vpop.f32.mrf.mxu0
        %2026 = vmatprep.mubr.bf16.mxu0 %v1809
        %2027 = vmatmul.mubr.bf16.gmra.mxu0 %v1808
        %v2028 = vpop.f32.mrf.mxu0
        %v2029 = vadd.f32 0.0, %v2028
        %v2030 = vpop.f32.mrf.mxu0
        %v2031 = vpop.f32.mrf.mxu0
        %v2032 = vadd.f32 0.0, %v2031
        %v2033 = vpop.f32.mrf.mxu0
        %2034 = vdwg.mxu0
        %v2035 = vadd.f32 %v914, %v1973
        %v2036 = vadd.f32 %v917, %v1976
        %v2037 = vadd.f32 %v922, %v1981
        %v2038 = vadd.f32 %v925, %v1984
        %v2039 = vadd.f32 %v930, %v1989
        %v2040 = vadd.f32 %v933, %v1992
        %v2041 = vadd.f32 %v938, %v1997
        %v2042 = vadd.f32 %v941, %v2000
        %v2043 = vadd.f32 %v946, %v2005
        %v2044 = vadd.f32 %v949, %v2008
        %v2045 = vadd.f32 %v954, %v2013
        %v2046 = vadd.f32 %v957, %v2016
        %v2047 = vadd.f32 %v962, %v2021
        %v2048 = vadd.f32 %v965, %v2024
        %v2049 = vadd.f32 %v970, %v2029
        %v2050 = vadd.f32 %v973, %v2032
        %2051 = vst [vmem:[%s332] sm:$0xff] %v2035
        %2052 = vst [vmem:[%s332 + $0x8] sm:$0xff] %v2036
        %2053 = vst [vmem:[%s332 + $0x10] sm:$0xff] %v2037
        %2054 = vst [vmem:[%s332 + $0x18] sm:$0xff] %v2038
        %2055 = vst [vmem:[%s332 + $0x20] sm:$0xff] %v2039
        %2056 = vst [vmem:[%s332 + $0x28] sm:$0xff] %v2040
        %2057 = vst [vmem:[%s332 + $0x30] sm:$0xff] %v2041
        %2058 = vst [vmem:[%s332 + $0x38] sm:$0xff] %v2042
        %2059 = vst [vmem:[%s332 + $0x40] sm:$0xff] %v2043
        %2060 = vst [vmem:[%s332 + $0x48] sm:$0xff] %v2044
        %2061 = vst [vmem:[%s332 + $0x50] sm:$0xff] %v2045
        %2062 = vst [vmem:[%s332 + $0x58] sm:$0xff] %v2046
        %2063 = vst [vmem:[%s332 + $0x60] sm:$0xff] %v2047
        %2064 = vst [vmem:[%s332 + $0x68] sm:$0xff] %v2048
        %2065 = vst [vmem:[%s332 + $0x70] sm:$0xff] %v2049
        %2066 = vst [vmem:[%s332 + $0x78] sm:$0xff] %v2050
        %s2067 = sand.u32 %s188, 1
        %s2068 = scalar_lea.sflag [#allocation4], %s2067
        %s2069 = sand.u32 %s188, 1
        %s2070 = smul.addr %s2069, 128
        %s2071 = scalar_lea.vmem [#allocation8], %s2070
        // Predicated region
        $region61: #{tpu_custom_call.1} parent=47 // pred_check
          %p2072 = pneg %p198
        $region62: #{tpu_custom_call.1} parent=47 // pred_check_branch
          %2074 = sbr.rel (%p2072) target = $region64
        $region63: #{tpu_custom_call.1} parent=47 // pred_region
          %s2075 = smul.u32 16, %s23
          %s2077 = ssub.s32 2048, 2048
          %2078 = vsyncadd %s2068, %s2077
          %s2079 = smul.addr %s2075, 128
          %s2080 = scalar_lea.hbm %s7, %s2079
          %s2081 = sshll.u32 %s2071, 4
          %s2082 = int_to_ptr.vmem [resolvable:$true] %s2081
          %2087 = dma.vmem_to_hbm [thread:$0]  %s2082, 2048, %s2080, %s2068, 128, 128, 8
        $region64: #{tpu_custom_call.1} parent=47 // pred_fallthru
          _
      $region48: #{tpu_custom_call.1} parent=5 // pred_fallthru
        _
      %p2088 = scmp.le.s32.totalorder 2, %s18
      // Predicated region
      $region65: #{tpu_custom_call.1} parent=5 // pred_check
        %p2089 = pneg %p2088
      $region66: #{tpu_custom_call.1} parent=5 // pred_check_branch
        %2091 = sbr.rel (%p2089) target = $region68
      $region67: #{tpu_custom_call.1} parent=5 // pred_region
        %s2092 = ssub.s32 %s18, 2
        // Predicated region
        $region69: #{tpu_custom_call.1} parent=67 // pred_check
          %p2093 = pneg %p204
        $region70: #{tpu_custom_call.1} parent=67 // pred_check_branch
          %2095 = sbr.rel (%p2093) target = $region72
        $region71: #{tpu_custom_call.1} parent=67 // pred_region
          %s2096 = sand.u32 %s189, 1
          %s2097 = scalar_lea.sflag [#allocation4], %s2096
          %s2098 = sand.u32 %s189, 1
          %s2099 = smul.addr %s2098, 128
          %s2100 = scalar_lea.vmem [#allocation8], %s2099
          %2101 = dma.done %s2097, 2048
        $region72: #{tpu_custom_call.1} parent=67 // pred_fallthru
          _
      $region68: #{tpu_custom_call.1} parent=5 // pred_fallthru
        _
    $region6: #{tpu_custom_call.1} parent=1 // loop_footer
      %s22 = sadd.s32 1, %s18
    $region7: #{tpu_custom_call.1} parent=1 // loop_footer_branch
      %17 = sbr.rel target = $region3
    $region8: #{tpu_custom_call.1} parent=1 // loop_exit
      _
    %2102 = vsyncpa [#allocation3], 1
    %s2103 = scalar_lea.sflag [#allocation3], 1
    %2104 = vsyncpa %s2103, 1
    %2105 = vsyncpa [#allocation6], 1
    %2106 = vsyncpa [#allocation4], 1
    %s2107 = scalar_lea.sflag [#allocation4], 1
    %2108 = vsyncpa %s2107, 1

</llo_original>
